<compile_context>
chip_gen: v7x
topology: tpu7x:2x2x1
jax: 0.10.0
libtpu: 0.0.40
codegen_flags: <defaults>
</compile_context>

<pallas_src>
import functools
import math

import jax
import jax.numpy as jnp
from jax import lax
from jax.experimental import pallas as pl
from jax.experimental.pallas import tpu as pltpu


# ----------------------------------------------------------------------------
# Kernel
# ----------------------------------------------------------------------------
def _upsample_conv_kernel(xm_ref, xt_ref, w_ref, b_ref, o_ref, xcat_ref, *, fused):
    """One (batch, row-block) step of fused 2x-nearest-upsample + 3x3 conv.

    xm_ref   : (Tp, Wp+2, C)   zero-padded input rows [r*Tp, r*Tp+Tp)      (compute dtype)
    xt_ref   : (2,  Wp+2, C)   zero-padded input rows [r*Tp+Tp, r*Tp+Tp+2) (halo tail)
    w_ref    : fused  -> (3, 3C, 4*Cg) row-offset-combined weights
               unfused-> (8, 2C, Cg)   parity-combined 2x2 taps
    b_ref    : (1, 4*Cg) fused / (1, Cg) unfused bias, f32
    o_ref    : (Tp, Wp, 4*Cg)  four output-parity channel blocks, lane-dense
    xcat_ref : (Tp+2, Wp, 3C)  column-im2col scratch (built once per step)
    """
    Tp, Wp, Cout4 = o_ref.shape
    C = xm_ref.shape[-1]

    # Column im2col, built ONCE per step: xcat[r, w, k*C + ci] = xpad[r, w + k, ci].
    # The per-matmul ROW shifts below are offsets on the untiled major axis (free);
    # the reshapes are free because Wp is padded to a multiple of 8 host side.
    for k in range(3):
        xcat_ref[0:Tp, :, k * C:(k + 1) * C] = (
            xm_ref[:, k:k + Wp, :].astype(xcat_ref.dtype))
        xcat_ref[Tp:Tp + 2, :, k * C:(k + 1) * C] = (
            xt_ref[:, k:k + Wp, :].astype(xcat_ref.dtype))

    bias = b_ref[...].astype(jnp.float32)                    # (1, Cout4) / (1, Cg)

    if fused:
        # 3 fat matmuls: K = 3C, N = 4*Cg.  Accumulate as values (registers /
        # v7x MRB) — no f32 VMEM scratch round trip — then store once.
        acc = None
        for s in range(3):
            lhs = xcat_ref[s:s + Tp].reshape(Tp * Wp, 3 * C)
            d = jnp.dot(lhs, w_ref[s], preferred_element_type=jnp.float32)
            acc = d if acc is None else acc + d
        o_ref[...] = (acc + bias).reshape(Tp, Wp, Cout4).astype(o_ref.dtype)
    else:
        # Per-parity form (large C): 8 matmuls of (Tp*Wp, 2C) x (2C, Cg).
        Cg = Cout4 // 4
        for a in range(2):                                    # output row parity
            for b in range(2):                                # output col parity
                wi = (a * 2 + b) * 2
                lhs0 = xcat_ref[a:a + Tp, :, b * C:(b + 2) * C].reshape(Tp * Wp, 2 * C)
                lhs1 = xcat_ref[a + 1:a + 1 + Tp, :, b * C:(b + 2) * C].reshape(Tp * Wp, 2 * C)
                y = (jnp.dot(lhs0, w_ref[wi], preferred_element_type=jnp.float32)
                     + jnp.dot(lhs1, w_ref[wi + 1], preferred_element_type=jnp.float32)
                     + bias)
                o_ref[:, :, (a * 2 + b) * Cg:(a * 2 + b + 1) * Cg] = (
                    y.reshape(Tp, Wp, Cg).astype(o_ref.dtype))


# ----------------------------------------------------------------------------
# Tiling / VMEM model
# ----------------------------------------------------------------------------
def _ceil_to(x, m):
    return -(-x // m) * m


def _vmem_limit_bytes():
    """Per-chip scoped-VMEM ceiling (conservative fraction of physical VMEM)."""
    try:
        cap = int(pltpu.get_tpu_info().vmem_capacity_bytes)
    except Exception:
        cap = 64 * 2**20                       # v7x-sized fallback: safe everywhere
    return max(32 * 2**20, min(int(cap * 0.65), 96 * 2**20))


def _pick_row_tile(H, Wp, C, Cg, in_item, out_item, fused, limit_bytes):
    """Largest even row tile whose (8,128)-padded, double-buffered footprint fits."""
    lane = lambda n: _ceil_to(max(n, 1), 128)
    sub = lambda n: _ceil_to(max(n, 1), 8)
    Cout4 = 4 * Cg

    if fused:
        w_bytes = 2 * 3 * sub(3 * C) * lane(Cout4) * in_item
    else:
        w_bytes = 2 * 8 * sub(2 * C) * lane(Cg) * in_item
    b_bytes = 2 * sub(1) * lane(Cout4) * 4

    def est(tp):
        in_main = 2 * tp * sub(Wp + 2) * lane(C) * in_item           # 2x-buffered slab
        in_tail = 2 * 2 * sub(Wp + 2) * lane(C) * in_item            # 2x-buffered halo
        out_blk = 2 * tp * sub(Wp) * lane(Cout4) * out_item          # 2x-buffered output
        xcat = (tp + 2) * sub(Wp) * lane(3 * C) * in_item            # im2col scratch
        acc_tmp = 2 * sub(tp * Wp) * lane(Cout4) * 4                 # f32 matmul temps
        return in_main + in_tail + out_blk + xcat + acc_tmp + w_bytes + b_bytes

    budget = limit_bytes - (2 << 20)
    cap = _ceil_to(H, 8)
    best = None
    for tp in range(8, cap + 1, 8):
        if est(tp) > budget:
            continue
        nrows = (H + tp - 1) // tp * tp
        key = (nrows, -tp)                     # min padded rows, then biggest tile
        if best is None or key < best[0]:
            best = (key, tp)
    if best is not None:
        return best[1]
    for tp in (8, 4, 2):                       # tiny fallbacks (must stay even)
        if est(tp) <= budget or tp == 2:
            return tp
    return 2


# ----------------------------------------------------------------------------
# Forward
# ----------------------------------------------------------------------------
@functools.partial(jax.jit, static_argnames=("compute_dtype",))
def upsample_forward(x_nchw, t, weight, bias, *, compute_dtype=jnp.bfloat16):
    """Matches UpSample.forward: nearest 2x upsample then 3x3 conv (pad=1).

    x_nchw: (N, C, H, W); t unused (signature parity with the PyTorch module);
    weight: (C, C, 3, 3) PyTorch layout; bias: (C,). Returns (N, C, 2H, 2W).
    """
    del t
    N, C, H, W = x_nchw.shape
    out_dtype = x_nchw.dtype
    in_item = jnp.dtype(compute_dtype).itemsize
    out_item = jnp.dtype(out_dtype).itemsize

    # Fat-MXU fused form when 3C fits one MXU K-tile; otherwise per-parity form.
    fused = (3 * C) <= 256
    # Output-channel group split keeps the VMEM-resident weight block small for
    # the large-C path (matters on v7x's 64 MiB VMEM).
    groups = 1
    if not fused:
        while (8 * (2 * C) * (C // groups) * in_item > (8 << 20)
               and C % (2 * groups) == 0):
            groups *= 2
    Cg = C // groups
    # TODO(synk): stream Co tiles via a third grid axis instead of wrapper-level
    # group calls (avoids re-reading the input when groups > 1).

    limit = _vmem_limit_bytes()
    Wp = _ceil_to(W, 8)                         # lane/sublane-friendly width
    Tp = _pick_row_tile(H, Wp, C, Cg, in_item, out_item, fused, limit)
    nrb = (H + Tp - 1) // Tp
    Hpad = nrb * Tp
    half_tp = Tp // 2

    # ---- input glue (single fused XLA pass): NCHW -> NHWC, cast, zero pad.
    # No halo re-blocking copy: overlapping row windows are expressed below by
    # passing this SAME array twice with offset Blocked specs.
    x = jnp.transpose(x_nchw, (0, 2, 3, 1)).astype(compute_dtype)       # (N,H,W,C)
    xp = jnp.pad(x, ((0, 0), (1, 1 + Hpad - H), (1, 1 + Wp - W), (0, 0)))

    # ---- parity-combined weights: upsample(2x nearest) o conv3x3 == four 2x2
    # convs at original resolution.  m[a, ry, dy] = 1 iff 3x3 tap dy maps to 2x2
    # tap ry for output parity a (same matrix for columns).
    wt = jnp.transpose(weight, (2, 3, 1, 0)).astype(jnp.float32)        # (dy,dx,ci,co)
    m = jnp.array([[[1., 0., 0.], [0., 1., 1.]],
                   [[1., 1., 0.], [0., 0., 1.]]], dtype=jnp.float32)
    k4 = jnp.einsum('ard,bse,deio->abrsio', m, m, wt)                   # (a,b,ry,rx,ci,co)

    kernel = functools.partial(_upsample_conv_kernel, fused=fused)

    group_outs = []
    for g in range(groups):
        k4g = k4[..., g * Cg:(g + 1) * Cg]
        bg = bias[g * Cg:(g + 1) * Cg].astype(jnp.float32)

        if fused:
            # W_s[k*C+ci, (a*2+b)*Cg+co] = k4[a,b,s-a,k-b,ci,co] for valid taps.
            wf = jnp.zeros((3, 3, C, 2, 2, Cg), jnp.float32)
            for s in range(3):
                for a in range(2):
                    ry = s - a
                    if 0 <= ry <= 1:
                        for k in range(3):
                            for b in range(2):
                                rx = k - b
                                if 0 <= rx <= 1:
                                    wf = wf.at[s, k, :, a, b, :].set(k4g[a, b, ry, rx])
            wk = wf.reshape(3, 3 * C, 4 * Cg).astype(compute_dtype)
            bk = jnp.tile(bg, 4).reshape(1, 4 * Cg)
        else:
            wk = k4g.reshape(8, 2 * C, Cg).astype(compute_dtype)        # [(a,b,ry), rx*C+ci, co]
            bk = bg.reshape(1, Cg)

        flops = 2 * N * Hpad * Wp * C * (4 * Cg) * (9 if fused else 4)
        bytes_accessed = int(xp.size * in_item + wk.size * in_item
                             + N * Hpad * Wp * 4 * Cg * out_item)

        out_g = pl.pallas_call(
            kernel,
            out_shape=jax.ShapeDtypeStruct((N, Hpad, Wp, 4 * Cg), out_dtype),
            grid=(N, nrb),
            in_specs=[
                # Main slab: rows [r*Tp, r*Tp + Tp) of the padded image.
                # TODO(synk): pipeline_mode=pl.Buffered(3) here for v5e once chip
                # detection is plumbed through (hides HBM latency jitter).
                pl.BlockSpec((None, Tp, Wp + 2, C), lambda n, r: (n, r, 0, 0)),
                # Halo tail: rows [r*Tp + Tp, r*Tp + Tp + 2) (same array, offset
                # by Tp/2 blocks of size 2) — overlapping windows with zero extra
                # HBM passes and full auto double-buffering.
                pl.BlockSpec((None, 2, Wp + 2, C),
                             lambda n, r: (n, (r + 1) * half_tp, 0, 0)),
                pl.BlockSpec(wk.shape, lambda n, r: (0, 0, 0)),   # VMEM-resident
                pl.BlockSpec(bk.shape, lambda n, r: (0, 0)),      # VMEM-resident
            ],
            out_specs=pl.BlockSpec((None, Tp, Wp, 4 * Cg), lambda n, r: (n, r, 0, 0)),
            scratch_shapes=[pltpu.VMEM((Tp + 2, Wp, 3 * C), compute_dtype)],
            compiler_params=pltpu.CompilerParams(
                dimension_semantics=("parallel", "parallel"),
                vmem_limit_bytes=int(limit)),
            cost_estimate=pl.CostEstimate(flops=int(flops), transcendentals=0,
                                          bytes_accessed=bytes_accessed),
        )(xp, xp, wk, bk)

        group_outs.append(out_g[:, :H, :W, :].reshape(N, H, W, 2, 2, Cg))

    out = group_outs[0] if groups == 1 else jnp.concatenate(group_outs, axis=-1)

    # ---- output glue: interleave parity planes into (N, C, 2H, 2W).
    # TODO(synk): emit NHWC / parity-plane output directly when the consumer
    # allows, dropping this one full-output NCHW interleave pass.
    out = jnp.transpose(out, (0, 5, 1, 3, 2, 4))          # (N, C, H, a, W, b)
    return out.reshape(N, C, 2 * H, 2 * W)


# ----------------------------------------------------------------------------
# Reference / params
# ----------------------------------------------------------------------------
def upsample_reference(x_nchw, weight, bias):
    """Pure-XLA reference: F.interpolate(scale=2, nearest) + Conv2d(3x3, pad=1)."""
    x_up = jnp.repeat(jnp.repeat(x_nchw, 2, axis=2), 2, axis=3)
    out = lax.conv_general_dilated(
        x_up, weight, window_strides=(1, 1), padding=((1, 1), (1, 1)),
        dimension_numbers=('NCHW', 'OIHW', 'NCHW'),
        preferred_element_type=jnp.float32,
        precision=lax.Precision.HIGHEST)
    return out + bias.reshape(1, -1, 1, 1)


def init_params(key, in_dim):
    """Xavier-uniform weight (as torch.nn.init.xavier_uniform_), zero bias."""
    fan_in = in_dim * 3 * 3
    fan_out = in_dim * 3 * 3
    bound = math.sqrt(6.0 / (fan_in + fan_out))
    weight = jax.random.uniform(key, (in_dim, in_dim, 3, 3),
                                minval=-bound, maxval=bound, dtype=jnp.float32)
    bias = jnp.zeros((in_dim,), dtype=jnp.float32)
    return weight, bias


if __name__ == "__main__":
    key = jax.random.PRNGKey(0)
    k_x, k_w, k_b, k_t, k_x2, k_w2, k_b2 = jax.random.split(key, 7)

    # ---- small-C shape (fused 3-matmul path), mirrors the module's forward(x, t).
    N, C, H, W = 2, 4, 16, 16
    x = jax.random.normal(k_x, (N, C, H, W), dtype=jnp.float32)
    t = jax.random.normal(k_t, (N,), dtype=jnp.float32)          # unused by the op
    weight, bias = init_params(k_w, C)
    # Bias is zero-initialized in the module; perturb so the bias path is exercised.
    bias = bias + 0.1 * jax.random.normal(k_b, (C,), dtype=jnp.float32)

    ref = upsample_reference(x, weight, bias)

    out_f32 = jax.block_until_ready(
        upsample_forward(x, t, weight, bias, compute_dtype=jnp.float32))
    assert out_f32.shape == (N, C, 2 * H, 2 * W), out_f32.shape
    err_f32 = float(jnp.max(jnp.abs(out_f32 - ref)))
    assert err_f32 < 3e-2, f"fused f32 path mismatch: max abs err = {err_f32}"

    out_bf16 = jax.block_until_ready(upsample_forward(x, t, weight, bias))
    assert out_bf16.shape == (N, C, 2 * H, 2 * W), out_bf16.shape
    err_bf16 = float(jnp.max(jnp.abs(out_bf16 - ref)))
    assert err_bf16 < 1e-1, f"fused bf16 path mismatch: max abs err = {err_bf16}"

    # ---- larger-C shape (per-parity 8-matmul path), tiny spatial size.
    N2, C2, H2, W2 = 1, 128, 8, 8
    x2 = jax.random.normal(k_x2, (N2, C2, H2, W2), dtype=jnp.float32)
    t2 = jnp.zeros((N2,), dtype=jnp.float32)
    w2, b2 = init_params(k_w2, C2)
    b2 = b2 + 0.1 * jax.random.normal(k_b2, (C2,), dtype=jnp.float32)

    ref2 = upsample_reference(x2, w2, b2)
    out2 = jax.block_until_ready(
        upsample_forward(x2, t2, w2, b2, compute_dtype=jnp.float32))
    assert out2.shape == (N2, C2, 2 * H2, 2 * W2), out2.shape
    scale2 = max(1.0, float(jnp.max(jnp.abs(ref2))))
    err2 = float(jnp.max(jnp.abs(out2 - ref2)))
    assert err2 < 3e-2 * scale2, f"unfused path mismatch: max abs err = {err2}"

    print("KERNEL_OK")
</pallas_src>

<mosaic_0001>
module attributes {stable_mosaic.version = 11 : i64} {
  func.func @_upsample_conv_kernel(%arg0: i32, %arg1: i32, %arg2: memref<1x16x18x4xf32, #tpu.memory_space<vmem>>, %arg3: memref<1x2x18x4xf32, #tpu.memory_space<vmem>>, %arg4: memref<3x12x16xf32, #tpu.memory_space<vmem>>, %arg5: memref<1x16xf32, #tpu.memory_space<vmem>>, %arg6: memref<1x16x16x16xf32, #tpu.memory_space<vmem>>, %arg7: memref<18x16x12xf32, #tpu.memory_space<vmem>>) attributes {dimension_semantics = [#tpu.dimension_semantics<parallel>, #tpu.dimension_semantics<parallel>], iteration_bounds = array<i64: 2, 1>, scalar_prefetch = 0 : i64, scratch_operands = 1 : i64, tpu.core_type = #tpu.core_type<tc>, window_params = [{transform_indices = @transform_0, window_bounds = array<i64: 1, 16, 18, 4>}, {transform_indices = @transform_1, window_bounds = array<i64: 1, 2, 18, 4>}, {pipeline_mode = #tpu.pipeline_mode<synchronous>, transform_indices = @transform_2, window_bounds = array<i64: 3, 12, 16>}, {pipeline_mode = #tpu.pipeline_mode<synchronous>, transform_indices = @transform_3, window_bounds = array<i64: 1, 16>}, {transform_indices = @transform_4, window_bounds = array<i64: 1, 16, 16, 16>}]} {
    %c0 = arith.constant 0 : index
    %c0_0 = arith.constant 0 : index
    %c0_1 = arith.constant 0 : index
    %c0_2 = arith.constant 0 : index
    %0 = vector.load %arg2[%c0, %c0_0, %c0_1, %c0_2] : memref<1x16x18x4xf32, #tpu.memory_space<vmem>>, vector<1x16x16x4xf32>
    %1 = vector.shape_cast %0 : vector<1x16x16x4xf32> to vector<16x16x4xf32>
    %c0_3 = arith.constant 0 : index
    %c0_4 = arith.constant 0 : index
    %c0_5 = arith.constant 0 : index
    %2 = vector.load %arg7[%c0_3, %c0_4, %c0_5] : memref<18x16x12xf32, #tpu.memory_space<vmem>>, vector<16x16x4xf32>
    tpu.vector_store %arg7[%c0_3, %c0_4, %c0_5], %1 {strides = array<i32>} : memref<18x16x12xf32, #tpu.memory_space<vmem>>, vector<16x16x4xf32>,
    %c0_6 = arith.constant 0 : index
    %c0_7 = arith.constant 0 : index
    %c0_8 = arith.constant 0 : index
    %c0_9 = arith.constant 0 : index
    %3 = vector.load %arg3[%c0_6, %c0_7, %c0_8, %c0_9] : memref<1x2x18x4xf32, #tpu.memory_space<vmem>>, vector<1x2x16x4xf32>
    %4 = vector.shape_cast %3 : vector<1x2x16x4xf32> to vector<2x16x4xf32>
    %c16 = arith.constant 16 : index
    %c0_10 = arith.constant 0 : index
    %c0_11 = arith.constant 0 : index
    %5 = vector.load %arg7[%c16, %c0_10, %c0_11] : memref<18x16x12xf32, #tpu.memory_space<vmem>>, vector<2x16x4xf32>
    tpu.vector_store %arg7[%c16, %c0_10, %c0_11], %4 {strides = array<i32>} : memref<18x16x12xf32, #tpu.memory_space<vmem>>, vector<2x16x4xf32>,
    %c0_12 = arith.constant 0 : index
    %c0_13 = arith.constant 0 : index
    %c1 = arith.constant 1 : index
    %c0_14 = arith.constant 0 : index
    %6 = vector.load %arg2[%c0_12, %c0_13, %c1, %c0_14] : memref<1x16x18x4xf32, #tpu.memory_space<vmem>>, vector<1x16x16x4xf32>
    %7 = vector.shape_cast %6 : vector<1x16x16x4xf32> to vector<16x16x4xf32>
    %c0_15 = arith.constant 0 : index
    %c0_16 = arith.constant 0 : index
    %c4 = arith.constant 4 : index
    %8 = vector.load %arg7[%c0_15, %c0_16, %c4] : memref<18x16x12xf32, #tpu.memory_space<vmem>>, vector<16x16x4xf32>
    tpu.vector_store %arg7[%c0_15, %c0_16, %c4], %7 {strides = array<i32>} : memref<18x16x12xf32, #tpu.memory_space<vmem>>, vector<16x16x4xf32>,
    %c0_17 = arith.constant 0 : index
    %c0_18 = arith.constant 0 : index
    %c1_19 = arith.constant 1 : index
    %c0_20 = arith.constant 0 : index
    %9 = vector.load %arg3[%c0_17, %c0_18, %c1_19, %c0_20] : memref<1x2x18x4xf32, #tpu.memory_space<vmem>>, vector<1x2x16x4xf32>
    %10 = vector.shape_cast %9 : vector<1x2x16x4xf32> to vector<2x16x4xf32>
    %c16_21 = arith.constant 16 : index
    %c0_22 = arith.constant 0 : index
    %c4_23 = arith.constant 4 : index
    %11 = vector.load %arg7[%c16_21, %c0_22, %c4_23] : memref<18x16x12xf32, #tpu.memory_space<vmem>>, vector<2x16x4xf32>
    tpu.vector_store %arg7[%c16_21, %c0_22, %c4_23], %10 {strides = array<i32>} : memref<18x16x12xf32, #tpu.memory_space<vmem>>, vector<2x16x4xf32>,
    %c0_24 = arith.constant 0 : index
    %c0_25 = arith.constant 0 : index
    %c2 = arith.constant 2 : index
    %c0_26 = arith.constant 0 : index
    %12 = vector.load %arg2[%c0_24, %c0_25, %c2, %c0_26] : memref<1x16x18x4xf32, #tpu.memory_space<vmem>>, vector<1x16x16x4xf32>
    %13 = vector.shape_cast %12 : vector<1x16x16x4xf32> to vector<16x16x4xf32>
    %c0_27 = arith.constant 0 : index
    %c0_28 = arith.constant 0 : index
    %c8 = arith.constant 8 : index
    %14 = vector.load %arg7[%c0_27, %c0_28, %c8] : memref<18x16x12xf32, #tpu.memory_space<vmem>>, vector<16x16x4xf32>
    tpu.vector_store %arg7[%c0_27, %c0_28, %c8], %13 {strides = array<i32>} : memref<18x16x12xf32, #tpu.memory_space<vmem>>, vector<16x16x4xf32>,
    %c0_29 = arith.constant 0 : index
    %c0_30 = arith.constant 0 : index
    %c2_31 = arith.constant 2 : index
    %c0_32 = arith.constant 0 : index
    %15 = vector.load %arg3[%c0_29, %c0_30, %c2_31, %c0_32] : memref<1x2x18x4xf32, #tpu.memory_space<vmem>>, vector<1x2x16x4xf32>
    %16 = vector.shape_cast %15 : vector<1x2x16x4xf32> to vector<2x16x4xf32>
    %c16_33 = arith.constant 16 : index
    %c0_34 = arith.constant 0 : index
    %c8_35 = arith.constant 8 : index
    %17 = vector.load %arg7[%c16_33, %c0_34, %c8_35] : memref<18x16x12xf32, #tpu.memory_space<vmem>>, vector<2x16x4xf32>
    tpu.vector_store %arg7[%c16_33, %c0_34, %c8_35], %16 {strides = array<i32>} : memref<18x16x12xf32, #tpu.memory_space<vmem>>, vector<2x16x4xf32>,
    %c0_36 = arith.constant 0 : index
    %c0_37 = arith.constant 0 : index
    %18 = vector.load %arg5[%c0_36, %c0_37] : memref<1x16xf32, #tpu.memory_space<vmem>>, vector<1x16xf32>
    %c0_38 = arith.constant 0 : index
    %c0_39 = arith.constant 0 : index
    %c0_40 = arith.constant 0 : index
    %19 = vector.load %arg7[%c0_38, %c0_39, %c0_40] : memref<18x16x12xf32, #tpu.memory_space<vmem>>, vector<16x16x12xf32>
    %20 = vector.shape_cast %19 : vector<16x16x12xf32> to vector<256x12xf32>
    %c0_41 = arith.constant 0 : index
    %c0_42 = arith.constant 0 : index
    %c0_43 = arith.constant 0 : index
    %21 = vector.load %arg4[%c0_41, %c0_42, %c0_43] : memref<3x12x16xf32, #tpu.memory_space<vmem>>, vector<1x12x16xf32>
    %22 = vector.shape_cast %21 : vector<1x12x16xf32> to vector<12x16xf32>
    %cst = arith.constant dense<0.000000e+00> : vector<256x16xf32>
    %23 = tpu.matmul %20, %22, %cst {dimension_numbers = #tpu.dot_dimension_numbers<[1], [0], [0], [1], [0, 0, 1, 1], [], []>} : vector<256x12xf32>, vector<12x16xf32>, vector<256x16xf32> -> vector<256x16xf32>
    %c1_44 = arith.constant 1 : index
    %c0_45 = arith.constant 0 : index
    %c0_46 = arith.constant 0 : index
    %24 = vector.load %arg7[%c1_44, %c0_45, %c0_46] : memref<18x16x12xf32, #tpu.memory_space<vmem>>, vector<16x16x12xf32>
    %25 = vector.shape_cast %24 : vector<16x16x12xf32> to vector<256x12xf32>
    %c1_47 = arith.constant 1 : index
    %c0_48 = arith.constant 0 : index
    %c0_49 = arith.constant 0 : index
    %26 = vector.load %arg4[%c1_47, %c0_48, %c0_49] : memref<3x12x16xf32, #tpu.memory_space<vmem>>, vector<1x12x16xf32>
    %27 = vector.shape_cast %26 : vector<1x12x16xf32> to vector<12x16xf32>
    %cst_50 = arith.constant dense<0.000000e+00> : vector<256x16xf32>
    %28 = tpu.matmul %25, %27, %cst_50 {dimension_numbers = #tpu.dot_dimension_numbers<[1], [0], [0], [1], [0, 0, 1, 1], [], []>} : vector<256x12xf32>, vector<12x16xf32>, vector<256x16xf32> -> vector<256x16xf32>
    %29 = arith.addf %23, %28 : vector<256x16xf32>
    %c2_51 = arith.constant 2 : index
    %c0_52 = arith.constant 0 : index
    %c0_53 = arith.constant 0 : index
    %30 = vector.load %arg7[%c2_51, %c0_52, %c0_53] : memref<18x16x12xf32, #tpu.memory_space<vmem>>, vector<16x16x12xf32>
    %31 = vector.shape_cast %30 : vector<16x16x12xf32> to vector<256x12xf32>
    %c2_54 = arith.constant 2 : index
    %c0_55 = arith.constant 0 : index
    %c0_56 = arith.constant 0 : index
    %32 = vector.load %arg4[%c2_54, %c0_55, %c0_56] : memref<3x12x16xf32, #tpu.memory_space<vmem>>, vector<1x12x16xf32>
    %33 = vector.shape_cast %32 : vector<1x12x16xf32> to vector<12x16xf32>
    %cst_57 = arith.constant dense<0.000000e+00> : vector<256x16xf32>
    %34 = tpu.matmul %31, %33, %cst_57 {dimension_numbers = #tpu.dot_dimension_numbers<[1], [0], [0], [1], [0, 0, 1, 1], [], []>} : vector<256x12xf32>, vector<12x16xf32>, vector<256x16xf32> -> vector<256x16xf32>
    %35 = arith.addf %29, %34 : vector<256x16xf32>
    %36 = vector.broadcast %18 : vector<1x16xf32> to vector<256x16xf32>
    %37 = arith.addf %35, %36 : vector<256x16xf32>
    %38 = vector.shape_cast %37 : vector<256x16xf32> to vector<16x16x16xf32>
    %c0_58 = arith.constant 0 : index
    %c0_59 = arith.constant 0 : index
    %c0_60 = arith.constant 0 : index
    %c0_61 = arith.constant 0 : index
    %39 = vector.load %arg6[%c0_58, %c0_59, %c0_60, %c0_61] : memref<1x16x16x16xf32, #tpu.memory_space<vmem>>, vector<1x16x16x16xf32>
    %40 = vector.shape_cast %39 : vector<1x16x16x16xf32> to vector<16x16x16xf32>
    %41 = vector.shape_cast %38 : vector<16x16x16xf32> to vector<1x16x16x16xf32>
    tpu.vector_store %arg6[%c0_58, %c0_59, %c0_60, %c0_61], %41 {strides = array<i32>} : memref<1x16x16x16xf32, #tpu.memory_space<vmem>>, vector<1x16x16x16xf32>,
    return
  }
  func.func @transform_0(%arg0: i32, %arg1: i32) -> (i32, i32, i32, i32) {
    %c0_i32 = arith.constant 0 : i32
    %c0_i32_0 = arith.constant 0 : i32
    %c0_i32_1 = arith.constant 0 : i32
    return %arg0, %arg1, %c0_i32, %c0_i32_0 : i32, i32, i32, i32
  }
  func.func @transform_1(%arg0: i32, %arg1: i32) -> (i32, i32, i32, i32) {
    %c1_i32 = arith.constant 1 : i32
    %0 = arith.addi %arg1, %c1_i32 : i32
    %c8_i32 = arith.constant 8 : i32
    %1 = arith.muli %0, %c8_i32 : i32
    %c0_i32 = arith.constant 0 : i32
    %c0_i32_0 = arith.constant 0 : i32
    %c0_i32_1 = arith.constant 0 : i32
    return %arg0, %1, %c0_i32, %c0_i32_0 : i32, i32, i32, i32
  }
  func.func @transform_2(%arg0: i32, %arg1: i32) -> (i32, i32, i32) {
    %c0_i32 = arith.constant 0 : i32
    %c0_i32_0 = arith.constant 0 : i32
    %c0_i32_1 = arith.constant 0 : i32
    %c0_i32_2 = arith.constant 0 : i32
    return %c0_i32, %c0_i32_0, %c0_i32_1 : i32, i32, i32
  }
  func.func @transform_3(%arg0: i32, %arg1: i32) -> (i32, i32) {
    %c0_i32 = arith.constant 0 : i32
    %c0_i32_0 = arith.constant 0 : i32
    %c0_i32_1 = arith.constant 0 : i32
    return %c0_i32, %c0_i32_0 : i32, i32
  }
  func.func @transform_4(%arg0: i32, %arg1: i32) -> (i32, i32, i32, i32) {
    %c0_i32 = arith.constant 0 : i32
    %c0_i32_0 = arith.constant 0 : i32
    %c0_i32_1 = arith.constant 0 : i32
    return %arg0, %arg1, %c0_i32, %c0_i32_0 : i32, i32, i32, i32
  }
}

</mosaic_0001>

<llo_original>
// kernel: tile.8
$region0: #{tile.8}
  #allocation0 [shape = 's32[1]{0}', space=sflag, size = 0x4, scoped, tag = 'scoped memory for tile.8']
  %s0 = inlined_call_operand.vmem [shape: f32[4], index: 0, kind: input, shape index: {}]
  %s1 = inlined_call_operand.vmem [shape: f32[4,4], index: 1, kind: output, shape index: {}]
  // Predicated region
  $region2: #{tile.8} parent=0 // pred_check
    _
  $region3: #{tile.8} parent=0 // pred_check_branch
    %3 = sbr.rel (0) target = $region5
  $region4: #{tile.8} parent=0 // pred_region
    _
  $region5: #{tile.8} parent=0 // pred_fallthru
    _
  %v4 = vld [vmem:[%s0] ss:$0 sm:$0xff]
  %5 = vst [vmem:[%s1] sm:$0xf] %v4

// kernel: tile.9
$region0: #{tile.9}
  %s0 = inlined_call_operand.vmem [shape: f32[4,4], index: 0, kind: input, shape index: {}]
  %s1 = inlined_call_operand.vmem [shape: f32[1,16], index: 1, kind: output, shape index: {}]
  $region1: #{tile.9} parent=0
    #allocation0 [shape = 'u8[4096]{0}', space=vmem, size = 0x1000, scoped, tag = 'scoped mem for output reshape']
    #allocation1 [shape = 'u8[4096]{0}', space=vmem, size = 0x1000, scoped, tag = 'scoped mem for input reshape']
    %s3 = sshllo.u32 0, 4
    %v4 = vld [vmem:[%s0] sm:%s3]
    %5 = vst [vmem:[#allocation1] sm:%s3] %v4
    %v6 = vld [vmem:[#allocation1] sm:$0x1]
    %vm7 = vcmask 31744
    %8 = vst.msk [vmem:[#allocation0] sm:$0x1] %vm7, %v6
    %s9 = scalar_lea.vmem [#allocation1], 3
    %v10 = vld [vmem:[%s9] sm:$0x1]
    %11 = vrot.lane.b32.xlu0 %v10, 12
    %v12 = vpop.permute.xlu0 %11
    %vm13 = vcmask 130144
    %14 = vst.msk [vmem:[#allocation0] sm:$0x1] %vm13, %v12
    %s15 = scalar_lea.vmem [#allocation1], 2
    %v16 = vld [vmem:[%s15] sm:$0x1]
    %17 = vrot.lane.b32.xlu0 %v16, 8
    %v18 = vpop.permute.xlu0 %17
    %vm19 = vcmask 97344
    %20 = vst.msk [vmem:[#allocation0] sm:$0x1] %vm19, %v18
    %s21 = scalar_lea.vmem [#allocation1], 1
    %v22 = vld [vmem:[%s21] sm:$0x1]
    %23 = vrot.lane.b32.xlu0 %v22, 4
    %v24 = vpop.permute.xlu0 %23
    %vm25 = vcmask 64544
    %26 = vst.msk [vmem:[#allocation0] sm:$0x1] %vm25, %v24
    %s28 = sshllo.u32 0, 1
    %v30 = vld [vmem:[#allocation0] sm:%s28]
    %s31 = sshllo.u32 0, 1
    %32 = vst [vmem:[%s1] sm:%s31] %v30

// kernel: upsample_forward.1
$region0: #{upsample_forward.1}
  #allocation0 [shape = 'u32[]', space=smem, size = 0x4, offset = 0x4, fixed_abs, tag = 'smem constant byte address 0x4 - core index']
  #allocation1 [shape = 'u32[144,128]{1,0:T(1,128)}', space=vmem, size = 0x12000, scoped, tag = 'internal scratch']
  #allocation2 [shape = 'f32[18,16,12]{2,1,0:T(8,128)}', space=vmem, size = 0x24000, scoped, tag = 'scratch operand']
  %s0 = inlined_call_operand.vmem [shape: f32[2,18,18,4], index: 0, kind: input, shape index: {}, may-alias: {0,1}]
  %s1 = inlined_call_operand.vmem [shape: f32[2,18,18,4], index: 1, kind: input, shape index: {}, may-alias: {0,1}]
  %s2 = inlined_call_operand.vmem [shape: f32[3,12,16], index: 2, kind: input, shape index: {}]
  %s3 = inlined_call_operand.vmem [shape: f32[1,16], index: 3, kind: input, shape index: {}]
  %s4 = inlined_call_operand.vmem [shape: f32[2,16,16,16], index: 4, kind: output, shape index: {}]
  %s5 = sld [smem:[#allocation0]]
  $region49: #{upsample_forward.1} parent=0
    _
  %s7 = ssub.s32 1, %s5
  %s8 = scalar_select 0, %s7, %s5
  loop: start=0, step=1, limit=4
  $region2: #{upsample_forward.1} parent=0 // loop_pre_header
    _
  $region3: #{upsample_forward.1} parent=0 // loop_header
    %s10 = sphi 0, %s14
    %p11 = scmp.ge.s32.totalorder %s10, 4
    %s17 = sphi 0, %s29
    %s18 = sphi 0, %s25
    %s19 = sphi 0, %s17
    %s20 = sphi 0, %s18
    %s21 = sphi 0, %s19
    %s22 = sphi 0, %s20
    %s34 = sphi 0, %s36
    %s37 = sphi 0, %s34
    %s38 = sphi 0, %s37
    %s54 = sphi 0, %s38
    %s66 = sphi 0, %s68
    %s69 = sphi 0, %s66
    %s70 = sphi 0, %s69
    %s86 = sphi 0, %s70
    %s90 = sphi 0, %s90
    %s92 = sphi 0, %s90
    %s93 = sphi 0, %s92
    %s107 = sphi 0, %s93
    %s111 = sphi 0, %s111
    %s113 = sphi 0, %s111
    %s114 = sphi 0, %s113
    %s128 = sphi 0, %s114
    %s136 = sphi 0, %s138
    %s139 = sphi 0, %s136
    %s140 = sphi 0, %s139
    %s156 = sphi 0, %s140
  $region4: #{upsample_forward.1} parent=0 // loop_header_branch
    %13 = sbr.rel (%p11) target = $region8
  $region5: #{upsample_forward.1} parent=0 // loop_body
    %s15 = ssub.s32 %s10, 1
    %s16 = ssub.s32 %s10, 2
    %s23 = sadd.s32 1, %s18
    %p24 = scmp.ge.s32.totalorder %s23, 1
    %s25 = scalar_select %p24, 0, %s23
    %s26 = sadd.s32 1, %s17
    %s27 = scalar_select %p24, %s26, %s17
    %p28 = scmp.ge.s32.totalorder %s27, 2
    %s29 = scalar_select %p28, 0, %s27
    %s30 = ssub.s32 %s17, %s29
    %s31 = ssub.s32 %s18, %s25
    %s32 = sor.u32 %s30, %s31
    %p33 = scmp.eq.s32.totalorder %s32, 0
    %s35 = sadd.s32 %s34, 1
    %s36 = scalar_select %p33, %s34, %s35
    %p39 = pneg %p33
    %p40 = scmp.eq.s32.totalorder %s10, 1
    %p41 = por %p39, %p40
    %p42 = scmp.ne.s32.totalorder %s34, %s37
    %p43 = scmp.eq.s32.totalorder %s10, 0
    %p44 = por %p42, %p43
    %p45 = scmp.ne.s32.totalorder %s34, %s37
    %p46 = scmp.eq.s32.totalorder %s15, 1
    %p47 = por %p45, %p46
    %p48 = scmp.ne.s32.totalorder %s37, %s38
    %p49 = scmp.eq.s32.totalorder %s15, 0
    %p50 = por %p48, %p49
    %p51 = scmp.ne.s32.totalorder %s37, %s38
    %p52 = scmp.eq.s32.totalorder %s16, 1
    %p53 = por %p51, %p52
    %p55 = scmp.ne.s32.totalorder %s38, %s54
    %p56 = scmp.eq.s32.totalorder %s16, 0
    %p57 = por %p55, %p56
    %s58 = sadd.s32 %s18, 1
    %s59 = smul.u32 %s58, 8
    %s60 = sadd.s32 %s25, 1
    %s61 = smul.u32 %s60, 8
    %s62 = ssub.s32 %s17, %s29
    %s63 = ssub.s32 %s59, %s61
    %s64 = sor.u32 %s62, %s63
    %p65 = scmp.eq.s32.totalorder %s64, 0
    %s67 = sadd.s32 %s66, 1
    %s68 = scalar_select %p65, %s66, %s67
    %p71 = pneg %p65
    %p72 = scmp.eq.s32.totalorder %s10, 1
    %p73 = por %p71, %p72
    %p74 = scmp.ne.s32.totalorder %s66, %s69
    %p75 = scmp.eq.s32.totalorder %s10, 0
    %p76 = por %p74, %p75
    %p77 = scmp.ne.s32.totalorder %s66, %s69
    %p78 = scmp.eq.s32.totalorder %s15, 1
    %p79 = por %p77, %p78
    %p80 = scmp.ne.s32.totalorder %s69, %s70
    %p81 = scmp.eq.s32.totalorder %s15, 0
    %p82 = por %p80, %p81
    %p83 = scmp.ne.s32.totalorder %s69, %s70
    %p84 = scmp.eq.s32.totalorder %s16, 1
    %p85 = por %p83, %p84
    %p87 = scmp.ne.s32.totalorder %s70, %s86
    %p88 = scmp.eq.s32.totalorder %s16, 0
    %p89 = por %p87, %p88
    %s91 = sadd.s32 %s90, 1
    %p94 = scmp.eq.s32.totalorder %s10, 1
    %p95 = scmp.ne.s32.totalorder %s90, %s92
    %p96 = scmp.eq.s32.totalorder %s10, 0
    %p97 = por %p95, %p96
    %p98 = scmp.ne.s32.totalorder %s90, %s92
    %p99 = scmp.eq.s32.totalorder %s15, 1
    %p100 = por %p98, %p99
    %p101 = scmp.ne.s32.totalorder %s92, %s93
    %p102 = scmp.eq.s32.totalorder %s15, 0
    %p103 = por %p101, %p102
    %p104 = scmp.ne.s32.totalorder %s92, %s93
    %p105 = scmp.eq.s32.totalorder %s16, 1
    %p106 = por %p104, %p105
    %p108 = scmp.ne.s32.totalorder %s93, %s107
    %p109 = scmp.eq.s32.totalorder %s16, 0
    %p110 = por %p108, %p109
    %s112 = sadd.s32 %s111, 1
    %p115 = scmp.eq.s32.totalorder %s10, 1
    %p116 = scmp.ne.s32.totalorder %s111, %s113
    %p117 = scmp.eq.s32.totalorder %s10, 0
    %p118 = por %p116, %p117
    %p119 = scmp.ne.s32.totalorder %s111, %s113
    %p120 = scmp.eq.s32.totalorder %s15, 1
    %p121 = por %p119, %p120
    %p122 = scmp.ne.s32.totalorder %s113, %s114
    %p123 = scmp.eq.s32.totalorder %s15, 0
    %p124 = por %p122, %p123
    %p125 = scmp.ne.s32.totalorder %s113, %s114
    %p126 = scmp.eq.s32.totalorder %s16, 1
    %p127 = por %p125, %p126
    %p129 = scmp.ne.s32.totalorder %s114, %s128
    %p130 = scmp.eq.s32.totalorder %s16, 0
    %p131 = por %p129, %p130
    %s132 = ssub.s32 %s17, %s29
    %s133 = ssub.s32 %s18, %s25
    %s134 = sor.u32 %s132, %s133
    %p135 = scmp.eq.s32.totalorder %s134, 0
    %s137 = sadd.s32 %s136, 1
    %s138 = scalar_select %p135, %s136, %s137
    %p141 = pneg %p135
    %p142 = scmp.eq.s32.totalorder %s10, 1
    %p143 = por %p141, %p142
    %p144 = scmp.ne.s32.totalorder %s136, %s139
    %p145 = scmp.eq.s32.totalorder %s10, 0
    %p146 = por %p144, %p145
    %p147 = scmp.ne.s32.totalorder %s136, %s139
    %p148 = scmp.eq.s32.totalorder %s15, 1
    %p149 = por %p147, %p148
    %p150 = scmp.ne.s32.totalorder %s139, %s140
    %p151 = scmp.eq.s32.totalorder %s15, 0
    %p152 = por %p150, %p151
    %p153 = scmp.ne.s32.totalorder %s139, %s140
    %p154 = scmp.eq.s32.totalorder %s16, 1
    %p155 = por %p153, %p154
    %p157 = scmp.ne.s32.totalorder %s140, %s156
    %p158 = scmp.eq.s32.totalorder %s16, 0
    %p159 = por %p157, %p158
    %p160 = scmp.le.s32.totalorder 1, %s10
    %p161 = scmp.lt.s32.totalorder %s10, 3
    %p162 = pnand %p160, %p161
    %p163 = pneg %p162
    // Predicated region
    $region9: #{upsample_forward.1} parent=5 // pred_check
      _
    $region10: #{upsample_forward.1} parent=5 // pred_check_branch
      %165 = sbr.rel (%p162) target = $region12
    $region11: #{upsample_forward.1} parent=5 // pred_region
      %s166 = ssub.s32 %s10, 1
      // Predicated region
      $region13: #{upsample_forward.1} parent=11 // pred_check
        %p167 = pneg %p103
      $region14: #{upsample_forward.1} parent=11 // pred_check_branch
        %169 = sbr.rel (%p167) target = $region16
      $region15: #{upsample_forward.1} parent=11 // pred_region
        _
      $region16: #{upsample_forward.1} parent=11 // pred_fallthru
        _
      // Predicated region
      $region17: #{upsample_forward.1} parent=11 // pred_check
        %p170 = pneg %p124
      $region18: #{upsample_forward.1} parent=11 // pred_check_branch
        %172 = sbr.rel (%p170) target = $region20
      $region19: #{upsample_forward.1} parent=11 // pred_region
        _
      $region20: #{upsample_forward.1} parent=11 // pred_fallthru
        _
    $region12: #{upsample_forward.1} parent=5 // pred_fallthru
      _
    %p173 = scmp.lt.s32.totalorder %s10, 2
    // Predicated region
    $region21: #{upsample_forward.1} parent=5 // pred_check
      %p174 = pneg %p173
    $region22: #{upsample_forward.1} parent=5 // pred_check_branch
      %176 = sbr.rel (%p174) target = $region24
    $region23: #{upsample_forward.1} parent=5 // pred_region
      // Predicated region
      $region25: #{upsample_forward.1} parent=23 // pred_check
        %p177 = pneg %p44
      $region26: #{upsample_forward.1} parent=23 // pred_check_branch
        %179 = sbr.rel (%p177) target = $region28
      $region27: #{upsample_forward.1} parent=23 // pred_region
        %s180 = smul.u32 16, %s18
        %s181 = ssub.s32 18, %s180
        %p182 = scmp.lt.s32.totalorder %s181, 16
        %s183 = scalar_select %p182, %s181, 16
        %s184 = smul.u32 128, %s183
        %s185 = smul.u32 %s184, 3
        %p186 = scmp.lt.s32.totalorder %s17, 1
        %s187 = scalar_select %p186, %s17, 1
        %p188 = scmp.lt.s32.totalorder %s180, 17
        %s189 = scalar_select %p188, %s180, 17
        %s190 = smul.addr %s189, 3
        %s191 = smul.addr %s187, 54
        %s192 = sadd.s32 %s190, %s191
        %s193 = smul.addr %s192, 8
        %s194 = scalar_lea.vmem %s0, %s193
        %s195 = smul.u32 16, %s18
        %s196 = ssub.s32 18, %s195
        %p197 = scmp.lt.s32.totalorder %s196, 16
        %s198 = scalar_select %p197, %s196, 16
        %s199 = smul.u32 128, %s198
        %s200 = smul.u32 %s199, 3
      $region28: #{upsample_forward.1} parent=23 // pred_fallthru
        _
      // Predicated region
      $region29: #{upsample_forward.1} parent=23 // pred_check
        %p201 = pneg %p76
      $region30: #{upsample_forward.1} parent=23 // pred_check_branch
        %203 = sbr.rel (%p201) target = $region32
      $region31: #{upsample_forward.1} parent=23 // pred_region
        %s204 = sadd.s32 %s18, 1
        %s205 = smul.u32 %s204, 8
        %s206 = smul.u32 2, %s205
        %p207 = scmp.lt.s32.totalorder %s17, 1
        %s208 = scalar_select %p207, %s17, 1
        %p209 = scmp.lt.s32.totalorder %s206, 17
        %s210 = scalar_select %p209, %s206, 17
        %s211 = smul.addr %s210, 3
        %s212 = smul.addr %s208, 54
        %s213 = sadd.s32 %s211, %s212
        %s214 = smul.addr %s213, 8
        %s215 = scalar_lea.vmem %s1, %s214
        %s216 = sadd.s32 %s18, 1
        %s217 = smul.u32 %s216, 8
        %s218 = smul.u32 2, %s217
      $region32: #{upsample_forward.1} parent=23 // pred_fallthru
        _
    $region24: #{upsample_forward.1} parent=5 // pred_fallthru
      _
    %p219 = scmp.le.s32.totalorder 1, %s10
    %p220 = scmp.lt.s32.totalorder %s10, 3
    %p221 = pnand %p219, %p220
    %p222 = pneg %p221
    // Predicated region
    $region33: #{upsample_forward.1} parent=5 // pred_check
      _
    $region34: #{upsample_forward.1} parent=5 // pred_check_branch
      %224 = sbr.rel (%p221) target = $region36
    $region35: #{upsample_forward.1} parent=5 // pred_region
      %s225 = ssub.s32 %s10, 1
      %s226 = smul.u32 16, %s20
      %s227 = ssub.s32 18, %s226
      %p228 = scmp.lt.s32.totalorder %s227, 16
      %s229 = scalar_select %p228, %s227, 16
      %s230 = smul.u32 128, %s229
      %s231 = smul.u32 %s230, 3
      %p232 = scmp.lt.s32.totalorder %s19, 1
      %s233 = scalar_select %p232, %s19, 1
      %p234 = scmp.lt.s32.totalorder %s226, 17
      %s235 = scalar_select %p234, %s226, 17
      %s236 = smul.addr %s235, 3
      %s237 = smul.addr %s233, 54
      %s238 = sadd.s32 %s236, %s237
      %s239 = smul.addr %s238, 8
      %s240 = scalar_lea.vmem %s0, %s239
      %p241 = pneg %p50
      %p242 = pneg %p47
      %s243 = sadd.s32 %s20, 1
      %s244 = smul.u32 %s243, 8
      %s245 = smul.u32 2, %s244
      %p246 = scmp.lt.s32.totalorder %s19, 1
      %s247 = scalar_select %p246, %s19, 1
      %p248 = scmp.lt.s32.totalorder %s245, 17
      %s249 = scalar_select %p248, %s245, 17
      %s250 = smul.addr %s249, 3
      %s251 = smul.addr %s247, 54
      %s252 = sadd.s32 %s250, %s251
      %s253 = smul.addr %s252, 8
      %s254 = scalar_lea.vmem %s1, %s253
      %p255 = pneg %p82
      %p256 = pneg %p79
      %p257 = pneg %p103
      %p258 = pneg %p100
      %p259 = pneg %p124
      %p260 = pneg %p121
      %p261 = pneg %p152
      %p262 = pneg %p149
      %s263 = smul.u32 16, %s20
      %p264 = scmp.lt.s32.totalorder %s19, 1
      %s265 = scalar_select %p264, %s19, 1
      %p266 = scmp.lt.s32.totalorder %s263, 15
      %s267 = scalar_select %p266, %s263, 15
      %s268 = smul.addr %s267, 2
      %s269 = smul.addr %s265, 32
      %s270 = sadd.s32 %s268, %s269
      %s271 = smul.addr %s270, 8
      %s272 = scalar_lea.vmem %s4, %s271
      %s273 = smul.u32 16, %s20
      %s274 = ssub.s32 18, %s273
      %p275 = scmp.lt.s32.totalorder %s274, 16
      %s276 = scalar_select %p275, %s274, 16
      %s277 = smul.u32 128, %s276
      %s278 = smul.u32 %s277, 3
      %p279 = scmp.lt.s32.totalorder %s19, 1
      %s280 = scalar_select %p279, %s19, 1
      %p281 = scmp.lt.s32.totalorder %s273, 17
      %s282 = scalar_select %p281, %s273, 17
      %s283 = smul.addr %s282, 3
      %s284 = smul.addr %s280, 54
      %s285 = sadd.s32 %s283, %s284
      %s286 = smul.addr %s285, 8
      %s287 = scalar_lea.vmem %s0, %s286
      %s288 = smul.u32 16, %s20
      %s289 = ssub.s32 18, %s288
      %p290 = scmp.lt.s32.totalorder %s289, 16
      %s291 = scalar_select %p290, %s289, 16
      %s292 = smul.u32 128, %s291
      %s293 = smul.u32 %s292, 3
      %s294 = sadd.s32 %s20, 1
      %s295 = smul.u32 %s294, 8
      %s296 = smul.u32 2, %s295
      %p297 = scmp.lt.s32.totalorder %s19, 1
      %s298 = scalar_select %p297, %s19, 1
      %p299 = scmp.lt.s32.totalorder %s296, 17
      %s300 = scalar_select %p299, %s296, 17
      %s301 = smul.addr %s300, 3
      %s302 = smul.addr %s298, 54
      %s303 = sadd.s32 %s301, %s302
      %s304 = smul.addr %s303, 8
      %s305 = scalar_lea.vmem %s1, %s304
      %s306 = sadd.s32 %s20, 1
      %s307 = smul.u32 %s306, 8
      %s308 = smul.u32 2, %s307
      %s309 = smul.u32 16, %s20
      %p310 = scmp.lt.s32.totalorder %s19, 1
      %s311 = scalar_select %p310, %s19, 1
      %p312 = scmp.lt.s32.totalorder %s309, 15
      %s313 = scalar_select %p312, %s309, 15
      %s314 = smul.addr %s313, 2
      %s315 = smul.addr %s311, 32
      %s316 = sadd.s32 %s314, %s315
      %s317 = smul.addr %s316, 8
      %s318 = scalar_lea.vmem %s4, %s317
      %s319 = smul.u32 16, %s20
      %v320 = vld [vmem:[%s287] sm:$0xff]
      %v321 = vld [vmem:[%s287 + $0x8] sm:$0xff]
      %v322 = vld [vmem:[%s287 + $0x18] sm:$0xff]
      %v323 = vld [vmem:[%s287 + $0x20] sm:$0xff]
      %v324 = vld [vmem:[%s287 + $0x30] sm:$0xff]
      %v325 = vld [vmem:[%s287 + $0x38] sm:$0xff]
      %v326 = vld [vmem:[%s287 + $0x48] sm:$0xff]
      %v327 = vld [vmem:[%s287 + $0x50] sm:$0xff]
      %v328 = vld [vmem:[%s287 + $0x60] sm:$0xff]
      %v329 = vld [vmem:[%s287 + $0x68] sm:$0xff]
      %v330 = vld [vmem:[%s287 + $0x78] sm:$0xff]
      %v331 = vld [vmem:[%s287 + $0x80] sm:$0xff]
      %v332 = vld [vmem:[%s287 + $0x90] sm:$0xff]
      %v333 = vld [vmem:[%s287 + $0x98] sm:$0xff]
      %v334 = vld [vmem:[%s287 + $0xa8] sm:$0xff]
      %v335 = vld [vmem:[%s287 + $0xb0] sm:$0xff]
      %v336 = vld [vmem:[%s287 + $0xc0] sm:$0xff]
      %v337 = vld [vmem:[%s287 + $0xc8] sm:$0xff]
      %v338 = vld [vmem:[%s287 + $0xd8] sm:$0xff]
      %v339 = vld [vmem:[%s287 + $0xe0] sm:$0xff]
      %v340 = vld [vmem:[%s287 + $0xf0] sm:$0xff]
      %v341 = vld [vmem:[%s287 + $0xf8] sm:$0xff]
      %v342 = vld [vmem:[%s287 + $0x108] sm:$0xff]
      %v343 = vld [vmem:[%s287 + $0x110] sm:$0xff]
      %v344 = vld [vmem:[%s287 + $0x120] sm:$0xff]
      %v345 = vld [vmem:[%s287 + $0x128] sm:$0xff]
      %v346 = vld [vmem:[%s287 + $0x138] sm:$0xff]
      %v347 = vld [vmem:[%s287 + $0x140] sm:$0xff]
      %v348 = vld [vmem:[%s287 + $0x150] sm:$0xff]
      %v349 = vld [vmem:[%s287 + $0x158] sm:$0xff]
      %v350 = vld [vmem:[%s287 + $0x168] sm:$0xff]
      %v351 = vld [vmem:[%s287 + $0x170] sm:$0xff]
      %vm352 = vcmask 31744
      %353 = vst.msk [vmem:[#allocation2] sm:$0xff] %vm352, %v320
      %354 = vst.msk [vmem:[#allocation2 + $0x8] sm:$0xff] %vm352, %v321
      %355 = vst.msk [vmem:[#allocation2 + $0x10] sm:$0xff] %vm352, %v322
      %356 = vst.msk [vmem:[#allocation2 + $0x18] sm:$0xff] %vm352, %v323
      %357 = vst.msk [vmem:[#allocation2 + $0x20] sm:$0xff] %vm352, %v324
      %358 = vst.msk [vmem:[#allocation2 + $0x28] sm:$0xff] %vm352, %v325
      %359 = vst.msk [vmem:[#allocation2 + $0x30] sm:$0xff] %vm352, %v326
      %360 = vst.msk [vmem:[#allocation2 + $0x38] sm:$0xff] %vm352, %v327
      %361 = vst.msk [vmem:[#allocation2 + $0x40] sm:$0xff] %vm352, %v328
      %362 = vst.msk [vmem:[#allocation2 + $0x48] sm:$0xff] %vm352, %v329
      %363 = vst.msk [vmem:[#allocation2 + $0x50] sm:$0xff] %vm352, %v330
      %364 = vst.msk [vmem:[#allocation2 + $0x58] sm:$0xff] %vm352, %v331
      %365 = vst.msk [vmem:[#allocation2 + $0x60] sm:$0xff] %vm352, %v332
      %366 = vst.msk [vmem:[#allocation2 + $0x68] sm:$0xff] %vm352, %v333
      %367 = vst.msk [vmem:[#allocation2 + $0x70] sm:$0xff] %vm352, %v334
      %368 = vst.msk [vmem:[#allocation2 + $0x78] sm:$0xff] %vm352, %v335
      %369 = vst.msk [vmem:[#allocation2 + $0x80] sm:$0xff] %vm352, %v336
      %370 = vst.msk [vmem:[#allocation2 + $0x88] sm:$0xff] %vm352, %v337
      %371 = vst.msk [vmem:[#allocation2 + $0x90] sm:$0xff] %vm352, %v338
      %372 = vst.msk [vmem:[#allocation2 + $0x98] sm:$0xff] %vm352, %v339
      %373 = vst.msk [vmem:[#allocation2 + $0xa0] sm:$0xff] %vm352, %v340
      %374 = vst.msk [vmem:[#allocation2 + $0xa8] sm:$0xff] %vm352, %v341
      %375 = vst.msk [vmem:[#allocation2 + $0xb0] sm:$0xff] %vm352, %v342
      %376 = vst.msk [vmem:[#allocation2 + $0xb8] sm:$0xff] %vm352, %v343
      %377 = vst.msk [vmem:[#allocation2 + $0xc0] sm:$0xff] %vm352, %v344
      %378 = vst.msk [vmem:[#allocation2 + $0xc8] sm:$0xff] %vm352, %v345
      %379 = vst.msk [vmem:[#allocation2 + $0xd0] sm:$0xff] %vm352, %v346
      %380 = vst.msk [vmem:[#allocation2 + $0xd8] sm:$0xff] %vm352, %v347
      %381 = vst.msk [vmem:[#allocation2 + $0xe0] sm:$0xff] %vm352, %v348
      %382 = vst.msk [vmem:[#allocation2 + $0xe8] sm:$0xff] %vm352, %v349
      %383 = vst.msk [vmem:[#allocation2 + $0xf0] sm:$0xff] %vm352, %v350
      %384 = vst.msk [vmem:[#allocation2 + $0xf8] sm:$0xff] %vm352, %v351
      %v385 = vld [vmem:[%s305] sm:$0xff]
      %v386 = vld [vmem:[%s305 + $0x8] sm:$0xff]
      %v387 = vld [vmem:[%s305 + $0x18] sm:$0xff]
      %v388 = vld [vmem:[%s305 + $0x20] sm:$0xff]
      %s389 = scalar_lea.vmem [#allocation2], 256
      %390 = vst.msk [vmem:[%s389] sm:$0xff] %vm352, %v385
      %391 = vst.msk [vmem:[%s389 + $0x8] sm:$0xff] %vm352, %v386
      %392 = vst.msk [vmem:[%s389 + $0x10] sm:$0xff] %vm352, %v387
      %393 = vst.msk [vmem:[%s389 + $0x18] sm:$0xff] %vm352, %v388
      %v394 = vld [vmem:[%s287 + $0x1] sm:$0xff]
      %v395 = vld [vmem:[%s287 + $0x9] sm:$0xff]
      %v396 = vld [vmem:[%s287 + $0x19] sm:$0xff]
      %v397 = vld [vmem:[%s287 + $0x21] sm:$0xff]
      %v398 = vld [vmem:[%s287 + $0x31] sm:$0xff]
      %v399 = vld [vmem:[%s287 + $0x39] sm:$0xff]
      %v400 = vld [vmem:[%s287 + $0x49] sm:$0xff]
      %v401 = vld [vmem:[%s287 + $0x51] sm:$0xff]
      %v402 = vld [vmem:[%s287 + $0x61] sm:$0xff]
      %v403 = vld [vmem:[%s287 + $0x69] sm:$0xff]
      %v404 = vld [vmem:[%s287 + $0x79] sm:$0xff]
      %v405 = vld [vmem:[%s287 + $0x81] sm:$0xff]
      %v406 = vld [vmem:[%s287 + $0x91] sm:$0xff]
      %v407 = vld [vmem:[%s287 + $0x99] sm:$0xff]
      %v408 = vld [vmem:[%s287 + $0xa9] sm:$0xff]
      %v409 = vld [vmem:[%s287 + $0xb1] sm:$0xff]
      %v410 = vld [vmem:[%s287 + $0xc1] sm:$0xff]
      %v411 = vld [vmem:[%s287 + $0xc9] sm:$0xff]
      %v412 = vld [vmem:[%s287 + $0xd9] sm:$0xff]
      %v413 = vld [vmem:[%s287 + $0xe1] sm:$0xff]
      %v414 = vld [vmem:[%s287 + $0xf1] sm:$0xff]
      %v415 = vld [vmem:[%s287 + $0xf9] sm:$0xff]
      %v416 = vld [vmem:[%s287 + $0x109] sm:$0xff]
      %v417 = vld [vmem:[%s287 + $0x111] sm:$0xff]
      %v418 = vld [vmem:[%s287 + $0x121] sm:$0xff]
      %v419 = vld [vmem:[%s287 + $0x129] sm:$0xff]
      %v420 = vld [vmem:[%s287 + $0x139] sm:$0xff]
      %v421 = vld [vmem:[%s287 + $0x141] sm:$0xff]
      %v422 = vld [vmem:[%s287 + $0x151] sm:$0xff]
      %v423 = vld [vmem:[%s287 + $0x159] sm:$0xff]
      %v424 = vld [vmem:[%s287 + $0x169] sm:$0xff]
      %v425 = vld [vmem:[%s287 + $0x171] sm:$0xff]
      %458 = vrot.lane.b32.xlu0 %v394, 4
      %v459 = vpop.permute.xlu0 %458
      %460 = vrot.lane.b32.xlu0 %v395, 4
      %v461 = vpop.permute.xlu0 %460
      %462 = vrot.lane.b32.xlu0 %v396, 4
      %v463 = vpop.permute.xlu0 %462
      %464 = vrot.lane.b32.xlu0 %v397, 4
      %v465 = vpop.permute.xlu0 %464
      %466 = vrot.lane.b32.xlu0 %v398, 4
      %v467 = vpop.permute.xlu0 %466
      %468 = vrot.lane.b32.xlu0 %v399, 4
      %v469 = vpop.permute.xlu0 %468
      %470 = vrot.lane.b32.xlu0 %v400, 4
      %v471 = vpop.permute.xlu0 %470
      %472 = vrot.lane.b32.xlu0 %v401, 4
      %v473 = vpop.permute.xlu0 %472
      %474 = vrot.lane.b32.xlu0 %v402, 4
      %v475 = vpop.permute.xlu0 %474
      %476 = vrot.lane.b32.xlu0 %v403, 4
      %v477 = vpop.permute.xlu0 %476
      %478 = vrot.lane.b32.xlu0 %v404, 4
      %v479 = vpop.permute.xlu0 %478
      %480 = vrot.lane.b32.xlu0 %v405, 4
      %v481 = vpop.permute.xlu0 %480
      %482 = vrot.lane.b32.xlu0 %v406, 4
      %v483 = vpop.permute.xlu0 %482
      %484 = vrot.lane.b32.xlu0 %v407, 4
      %v485 = vpop.permute.xlu0 %484
      %486 = vrot.lane.b32.xlu0 %v408, 4
      %v487 = vpop.permute.xlu0 %486
      %488 = vrot.lane.b32.xlu0 %v409, 4
      %v489 = vpop.permute.xlu0 %488
      %490 = vrot.lane.b32.xlu0 %v410, 4
      %v491 = vpop.permute.xlu0 %490
      %492 = vrot.lane.b32.xlu0 %v411, 4
      %v493 = vpop.permute.xlu0 %492
      %494 = vrot.lane.b32.xlu0 %v412, 4
      %v495 = vpop.permute.xlu0 %494
      %496 = vrot.lane.b32.xlu0 %v413, 4
      %v497 = vpop.permute.xlu0 %496
      %498 = vrot.lane.b32.xlu0 %v414, 4
      %v499 = vpop.permute.xlu0 %498
      %500 = vrot.lane.b32.xlu0 %v415, 4
      %v501 = vpop.permute.xlu0 %500
      %502 = vrot.lane.b32.xlu0 %v416, 4
      %v503 = vpop.permute.xlu0 %502
      %504 = vrot.lane.b32.xlu0 %v417, 4
      %v505 = vpop.permute.xlu0 %504
      %506 = vrot.lane.b32.xlu0 %v418, 4
      %v507 = vpop.permute.xlu0 %506
      %508 = vrot.lane.b32.xlu0 %v419, 4
      %v509 = vpop.permute.xlu0 %508
      %510 = vrot.lane.b32.xlu0 %v420, 4
      %v511 = vpop.permute.xlu0 %510
      %512 = vrot.lane.b32.xlu0 %v421, 4
      %v513 = vpop.permute.xlu0 %512
      %514 = vrot.lane.b32.xlu0 %v422, 4
      %v515 = vpop.permute.xlu0 %514
      %516 = vrot.lane.b32.xlu0 %v423, 4
      %v517 = vpop.permute.xlu0 %516
      %518 = vrot.lane.b32.xlu0 %v424, 4
      %v519 = vpop.permute.xlu0 %518
      %520 = vrot.lane.b32.xlu0 %v425, 4
      %v521 = vpop.permute.xlu0 %520
      %vm554 = vcmask 64544
      %555 = vst.msk [vmem:[#allocation2] sm:$0xff] %vm554, %v459
      %556 = vst.msk [vmem:[#allocation2 + $0x8] sm:$0xff] %vm554, %v461
      %557 = vst.msk [vmem:[#allocation2 + $0x10] sm:$0xff] %vm554, %v463
      %558 = vst.msk [vmem:[#allocation2 + $0x18] sm:$0xff] %vm554, %v465
      %559 = vst.msk [vmem:[#allocation2 + $0x20] sm:$0xff] %vm554, %v467
      %560 = vst.msk [vmem:[#allocation2 + $0x28] sm:$0xff] %vm554, %v469
      %561 = vst.msk [vmem:[#allocation2 + $0x30] sm:$0xff] %vm554, %v471
      %562 = vst.msk [vmem:[#allocation2 + $0x38] sm:$0xff] %vm554, %v473
      %563 = vst.msk [vmem:[#allocation2 + $0x40] sm:$0xff] %vm554, %v475
      %564 = vst.msk [vmem:[#allocation2 + $0x48] sm:$0xff] %vm554, %v477
      %565 = vst.msk [vmem:[#allocation2 + $0x50] sm:$0xff] %vm554, %v479
      %566 = vst.msk [vmem:[#allocation2 + $0x58] sm:$0xff] %vm554, %v481
      %567 = vst.msk [vmem:[#allocation2 + $0x60] sm:$0xff] %vm554, %v483
      %568 = vst.msk [vmem:[#allocation2 + $0x68] sm:$0xff] %vm554, %v485
      %569 = vst.msk [vmem:[#allocation2 + $0x70] sm:$0xff] %vm554, %v487
      %570 = vst.msk [vmem:[#allocation2 + $0x78] sm:$0xff] %vm554, %v489
      %571 = vst.msk [vmem:[#allocation2 + $0x80] sm:$0xff] %vm554, %v491
      %572 = vst.msk [vmem:[#allocation2 + $0x88] sm:$0xff] %vm554, %v493
      %573 = vst.msk [vmem:[#allocation2 + $0x90] sm:$0xff] %vm554, %v495
      %574 = vst.msk [vmem:[#allocation2 + $0x98] sm:$0xff] %vm554, %v497
      %575 = vst.msk [vmem:[#allocation2 + $0xa0] sm:$0xff] %vm554, %v499
      %576 = vst.msk [vmem:[#allocation2 + $0xa8] sm:$0xff] %vm554, %v501
      %577 = vst.msk [vmem:[#allocation2 + $0xb0] sm:$0xff] %vm554, %v503
      %578 = vst.msk [vmem:[#allocation2 + $0xb8] sm:$0xff] %vm554, %v505
      %579 = vst.msk [vmem:[#allocation2 + $0xc0] sm:$0xff] %vm554, %v507
      %580 = vst.msk [vmem:[#allocation2 + $0xc8] sm:$0xff] %vm554, %v509
      %581 = vst.msk [vmem:[#allocation2 + $0xd0] sm:$0xff] %vm554, %v511
      %582 = vst.msk [vmem:[#allocation2 + $0xd8] sm:$0xff] %vm554, %v513
      %583 = vst.msk [vmem:[#allocation2 + $0xe0] sm:$0xff] %vm554, %v515
      %584 = vst.msk [vmem:[#allocation2 + $0xe8] sm:$0xff] %vm554, %v517
      %585 = vst.msk [vmem:[#allocation2 + $0xf0] sm:$0xff] %vm554, %v519
      %586 = vst.msk [vmem:[#allocation2 + $0xf8] sm:$0xff] %vm554, %v521
      %v587 = vld [vmem:[%s305 + $0x1] sm:$0xff]
      %v588 = vld [vmem:[%s305 + $0x9] sm:$0xff]
      %v589 = vld [vmem:[%s305 + $0x19] sm:$0xff]
      %v590 = vld [vmem:[%s305 + $0x21] sm:$0xff]
      %595 = vrot.lane.b32.xlu0 %v587, 4
      %v596 = vpop.permute.xlu0 %595
      %597 = vrot.lane.b32.xlu0 %v588, 4
      %v598 = vpop.permute.xlu0 %597
      %599 = vrot.lane.b32.xlu0 %v589, 4
      %v600 = vpop.permute.xlu0 %599
      %601 = vrot.lane.b32.xlu0 %v590, 4
      %v602 = vpop.permute.xlu0 %601
      %607 = vst.msk [vmem:[%s389] sm:$0xff] %vm554, %v596
      %608 = vst.msk [vmem:[%s389 + $0x8] sm:$0xff] %vm554, %v598
      %609 = vst.msk [vmem:[%s389 + $0x10] sm:$0xff] %vm554, %v600
      %610 = vst.msk [vmem:[%s389 + $0x18] sm:$0xff] %vm554, %v602
      %v611 = vld [vmem:[%s287 + $0x2] sm:$0xff]
      %v612 = vld [vmem:[%s287 + $0xa] sm:$0xff]
      %v613 = vld [vmem:[%s287 + $0x1a] sm:$0xff]
      %v614 = vld [vmem:[%s287 + $0x22] sm:$0xff]
      %v615 = vld [vmem:[%s287 + $0x32] sm:$0xff]
      %v616 = vld [vmem:[%s287 + $0x3a] sm:$0xff]
      %v617 = vld [vmem:[%s287 + $0x4a] sm:$0xff]
      %v618 = vld [vmem:[%s287 + $0x52] sm:$0xff]
      %v619 = vld [vmem:[%s287 + $0x62] sm:$0xff]
      %v620 = vld [vmem:[%s287 + $0x6a] sm:$0xff]
      %v621 = vld [vmem:[%s287 + $0x7a] sm:$0xff]
      %v622 = vld [vmem:[%s287 + $0x82] sm:$0xff]
      %v623 = vld [vmem:[%s287 + $0x92] sm:$0xff]
      %v624 = vld [vmem:[%s287 + $0x9a] sm:$0xff]
      %v625 = vld [vmem:[%s287 + $0xaa] sm:$0xff]
      %v626 = vld [vmem:[%s287 + $0xb2] sm:$0xff]
      %v627 = vld [vmem:[%s287 + $0xc2] sm:$0xff]
      %v628 = vld [vmem:[%s287 + $0xca] sm:$0xff]
      %v629 = vld [vmem:[%s287 + $0xda] sm:$0xff]
      %v630 = vld [vmem:[%s287 + $0xe2] sm:$0xff]
      %v631 = vld [vmem:[%s287 + $0xf2] sm:$0xff]
      %v632 = vld [vmem:[%s287 + $0xfa] sm:$0xff]
      %v633 = vld [vmem:[%s287 + $0x10a] sm:$0xff]
      %v634 = vld [vmem:[%s287 + $0x112] sm:$0xff]
      %v635 = vld [vmem:[%s287 + $0x122] sm:$0xff]
      %v636 = vld [vmem:[%s287 + $0x12a] sm:$0xff]
      %v637 = vld [vmem:[%s287 + $0x13a] sm:$0xff]
      %v638 = vld [vmem:[%s287 + $0x142] sm:$0xff]
      %v639 = vld [vmem:[%s287 + $0x152] sm:$0xff]
      %v640 = vld [vmem:[%s287 + $0x15a] sm:$0xff]
      %v641 = vld [vmem:[%s287 + $0x16a] sm:$0xff]
      %v642 = vld [vmem:[%s287 + $0x172] sm:$0xff]
      %675 = vrot.lane.b32.xlu0 %v611, 8
      %v676 = vpop.permute.xlu0 %675
      %677 = vrot.lane.b32.xlu0 %v612, 8
      %v678 = vpop.permute.xlu0 %677
      %679 = vrot.lane.b32.xlu0 %v613, 8
      %v680 = vpop.permute.xlu0 %679
      %681 = vrot.lane.b32.xlu0 %v614, 8
      %v682 = vpop.permute.xlu0 %681
      %683 = vrot.lane.b32.xlu0 %v615, 8
      %v684 = vpop.permute.xlu0 %683
      %685 = vrot.lane.b32.xlu0 %v616, 8
      %v686 = vpop.permute.xlu0 %685
      %687 = vrot.lane.b32.xlu0 %v617, 8
      %v688 = vpop.permute.xlu0 %687
      %689 = vrot.lane.b32.xlu0 %v618, 8
      %v690 = vpop.permute.xlu0 %689
      %691 = vrot.lane.b32.xlu0 %v619, 8
      %v692 = vpop.permute.xlu0 %691
      %693 = vrot.lane.b32.xlu0 %v620, 8
      %v694 = vpop.permute.xlu0 %693
      %695 = vrot.lane.b32.xlu0 %v621, 8
      %v696 = vpop.permute.xlu0 %695
      %697 = vrot.lane.b32.xlu0 %v622, 8
      %v698 = vpop.permute.xlu0 %697
      %699 = vrot.lane.b32.xlu0 %v623, 8
      %v700 = vpop.permute.xlu0 %699
      %701 = vrot.lane.b32.xlu0 %v624, 8
      %v702 = vpop.permute.xlu0 %701
      %703 = vrot.lane.b32.xlu0 %v625, 8
      %v704 = vpop.permute.xlu0 %703
      %705 = vrot.lane.b32.xlu0 %v626, 8
      %v706 = vpop.permute.xlu0 %705
      %707 = vrot.lane.b32.xlu0 %v627, 8
      %v708 = vpop.permute.xlu0 %707
      %709 = vrot.lane.b32.xlu0 %v628, 8
      %v710 = vpop.permute.xlu0 %709
      %711 = vrot.lane.b32.xlu0 %v629, 8
      %v712 = vpop.permute.xlu0 %711
      %713 = vrot.lane.b32.xlu0 %v630, 8
      %v714 = vpop.permute.xlu0 %713
      %715 = vrot.lane.b32.xlu0 %v631, 8
      %v716 = vpop.permute.xlu0 %715
      %717 = vrot.lane.b32.xlu0 %v632, 8
      %v718 = vpop.permute.xlu0 %717
      %719 = vrot.lane.b32.xlu0 %v633, 8
      %v720 = vpop.permute.xlu0 %719
      %721 = vrot.lane.b32.xlu0 %v634, 8
      %v722 = vpop.permute.xlu0 %721
      %723 = vrot.lane.b32.xlu0 %v635, 8
      %v724 = vpop.permute.xlu0 %723
      %725 = vrot.lane.b32.xlu0 %v636, 8
      %v726 = vpop.permute.xlu0 %725
      %727 = vrot.lane.b32.xlu0 %v637, 8
      %v728 = vpop.permute.xlu0 %727
      %729 = vrot.lane.b32.xlu0 %v638, 8
      %v730 = vpop.permute.xlu0 %729
      %731 = vrot.lane.b32.xlu0 %v639, 8
      %v732 = vpop.permute.xlu0 %731
      %733 = vrot.lane.b32.xlu0 %v640, 8
      %v734 = vpop.permute.xlu0 %733
      %735 = vrot.lane.b32.xlu0 %v641, 8
      %v736 = vpop.permute.xlu0 %735
      %737 = vrot.lane.b32.xlu0 %v642, 8
      %v738 = vpop.permute.xlu0 %737
      %vm771 = vcmask 97344
      %772 = vst.msk [vmem:[#allocation2] sm:$0xff] %vm771, %v676
      %773 = vst.msk [vmem:[#allocation2 + $0x8] sm:$0xff] %vm771, %v678
      %774 = vst.msk [vmem:[#allocation2 + $0x10] sm:$0xff] %vm771, %v680
      %775 = vst.msk [vmem:[#allocation2 + $0x18] sm:$0xff] %vm771, %v682
      %776 = vst.msk [vmem:[#allocation2 + $0x20] sm:$0xff] %vm771, %v684
      %777 = vst.msk [vmem:[#allocation2 + $0x28] sm:$0xff] %vm771, %v686
      %778 = vst.msk [vmem:[#allocation2 + $0x30] sm:$0xff] %vm771, %v688
      %779 = vst.msk [vmem:[#allocation2 + $0x38] sm:$0xff] %vm771, %v690
      %780 = vst.msk [vmem:[#allocation2 + $0x40] sm:$0xff] %vm771, %v692
      %781 = vst.msk [vmem:[#allocation2 + $0x48] sm:$0xff] %vm771, %v694
      %782 = vst.msk [vmem:[#allocation2 + $0x50] sm:$0xff] %vm771, %v696
      %783 = vst.msk [vmem:[#allocation2 + $0x58] sm:$0xff] %vm771, %v698
      %784 = vst.msk [vmem:[#allocation2 + $0x60] sm:$0xff] %vm771, %v700
      %785 = vst.msk [vmem:[#allocation2 + $0x68] sm:$0xff] %vm771, %v702
      %786 = vst.msk [vmem:[#allocation2 + $0x70] sm:$0xff] %vm771, %v704
      %787 = vst.msk [vmem:[#allocation2 + $0x78] sm:$0xff] %vm771, %v706
      %788 = vst.msk [vmem:[#allocation2 + $0x80] sm:$0xff] %vm771, %v708
      %789 = vst.msk [vmem:[#allocation2 + $0x88] sm:$0xff] %vm771, %v710
      %790 = vst.msk [vmem:[#allocation2 + $0x90] sm:$0xff] %vm771, %v712
      %791 = vst.msk [vmem:[#allocation2 + $0x98] sm:$0xff] %vm771, %v714
      %792 = vst.msk [vmem:[#allocation2 + $0xa0] sm:$0xff] %vm771, %v716
      %793 = vst.msk [vmem:[#allocation2 + $0xa8] sm:$0xff] %vm771, %v718
      %794 = vst.msk [vmem:[#allocation2 + $0xb0] sm:$0xff] %vm771, %v720
      %795 = vst.msk [vmem:[#allocation2 + $0xb8] sm:$0xff] %vm771, %v722
      %796 = vst.msk [vmem:[#allocation2 + $0xc0] sm:$0xff] %vm771, %v724
      %797 = vst.msk [vmem:[#allocation2 + $0xc8] sm:$0xff] %vm771, %v726
      %798 = vst.msk [vmem:[#allocation2 + $0xd0] sm:$0xff] %vm771, %v728
      %799 = vst.msk [vmem:[#allocation2 + $0xd8] sm:$0xff] %vm771, %v730
      %800 = vst.msk [vmem:[#allocation2 + $0xe0] sm:$0xff] %vm771, %v732
      %801 = vst.msk [vmem:[#allocation2 + $0xe8] sm:$0xff] %vm771, %v734
      %802 = vst.msk [vmem:[#allocation2 + $0xf0] sm:$0xff] %vm771, %v736
      %803 = vst.msk [vmem:[#allocation2 + $0xf8] sm:$0xff] %vm771, %v738
      %v804 = vld [vmem:[%s305 + $0x2] sm:$0xff]
      %v805 = vld [vmem:[%s305 + $0xa] sm:$0xff]
      %v806 = vld [vmem:[%s305 + $0x1a] sm:$0xff]
      %v807 = vld [vmem:[%s305 + $0x22] sm:$0xff]
      %812 = vrot.lane.b32.xlu0 %v804, 8
      %v813 = vpop.permute.xlu0 %812
      %814 = vrot.lane.b32.xlu0 %v805, 8
      %v815 = vpop.permute.xlu0 %814
      %816 = vrot.lane.b32.xlu0 %v806, 8
      %v817 = vpop.permute.xlu0 %816
      %818 = vrot.lane.b32.xlu0 %v807, 8
      %v819 = vpop.permute.xlu0 %818
      %824 = vst.msk [vmem:[%s389] sm:$0xff] %vm771, %v813
      %825 = vst.msk [vmem:[%s389 + $0x8] sm:$0xff] %vm771, %v815
      %826 = vst.msk [vmem:[%s389 + $0x10] sm:$0xff] %vm771, %v817
      %827 = vst.msk [vmem:[%s389 + $0x18] sm:$0xff] %vm771, %v819
      %v828 = vld [vmem:[%s3] sm:$0x1]
      %v829 = vld [vmem:[#allocation2] sm:$0xff]
      %v830 = vld [vmem:[#allocation2 + $0x8] sm:$0xff]
      %v831 = vld [vmem:[#allocation2 + $0x10] sm:$0xff]
      %v832 = vld [vmem:[#allocation2 + $0x18] sm:$0xff]
      %v833 = vld [vmem:[#allocation2 + $0x20] sm:$0xff]
      %v834 = vld [vmem:[#allocation2 + $0x28] sm:$0xff]
      %v835 = vld [vmem:[#allocation2 + $0x30] sm:$0xff]
      %v836 = vld [vmem:[#allocation2 + $0x38] sm:$0xff]
      %v837 = vld [vmem:[#allocation2 + $0x40] sm:$0xff]
      %v838 = vld [vmem:[#allocation2 + $0x48] sm:$0xff]
      %v839 = vld [vmem:[#allocation2 + $0x50] sm:$0xff]
      %v840 = vld [vmem:[#allocation2 + $0x58] sm:$0xff]
      %v841 = vld [vmem:[#allocation2 + $0x60] sm:$0xff]
      %v842 = vld [vmem:[#allocation2 + $0x68] sm:$0xff]
      %v843 = vld [vmem:[#allocation2 + $0x70] sm:$0xff]
      %v844 = vld [vmem:[#allocation2 + $0x78] sm:$0xff]
      %v845 = vld [vmem:[#allocation2 + $0x80] sm:$0xff]
      %v846 = vld [vmem:[#allocation2 + $0x88] sm:$0xff]
      %v847 = vld [vmem:[#allocation2 + $0x90] sm:$0xff]
      %v848 = vld [vmem:[#allocation2 + $0x98] sm:$0xff]
      %v849 = vld [vmem:[#allocation2 + $0xa0] sm:$0xff]
      %v850 = vld [vmem:[#allocation2 + $0xa8] sm:$0xff]
      %v851 = vld [vmem:[#allocation2 + $0xb0] sm:$0xff]
      %v852 = vld [vmem:[#allocation2 + $0xb8] sm:$0xff]
      %v853 = vld [vmem:[#allocation2 + $0xc0] sm:$0xff]
      %v854 = vld [vmem:[#allocation2 + $0xc8] sm:$0xff]
      %v855 = vld [vmem:[#allocation2 + $0xd0] sm:$0xff]
      %v856 = vld [vmem:[#allocation2 + $0xd8] sm:$0xff]
      %v857 = vld [vmem:[#allocation2 + $0xe0] sm:$0xff]
      %v858 = vld [vmem:[#allocation2 + $0xe8] sm:$0xff]
      %v859 = vld [vmem:[#allocation2 + $0xf0] sm:$0xff]
      %v860 = vld [vmem:[#allocation2 + $0xf8] sm:$0xff]
      %v861 = vld [vmem:[%s2] sm:$0xff]
      %v862 = vld [vmem:[%s2 + $0x8] sm:$0xf]
      %s863 = scalar_lea.vmem [#allocation2], 16
      %v864 = vld [vmem:[%s863] sm:$0xff]
      %v865 = vld [vmem:[%s863 + $0x8] sm:$0xff]
      %v866 = vld [vmem:[%s863 + $0x10] sm:$0xff]
      %v867 = vld [vmem:[%s863 + $0x18] sm:$0xff]
      %v868 = vld [vmem:[%s863 + $0x20] sm:$0xff]
      %v869 = vld [vmem:[%s863 + $0x28] sm:$0xff]
      %v870 = vld [vmem:[%s863 + $0x30] sm:$0xff]
      %v871 = vld [vmem:[%s863 + $0x38] sm:$0xff]
      %v872 = vld [vmem:[%s863 + $0x40] sm:$0xff]
      %v873 = vld [vmem:[%s863 + $0x48] sm:$0xff]
      %v874 = vld [vmem:[%s863 + $0x50] sm:$0xff]
      %v875 = vld [vmem:[%s863 + $0x58] sm:$0xff]
      %v876 = vld [vmem:[%s863 + $0x60] sm:$0xff]
      %v877 = vld [vmem:[%s863 + $0x68] sm:$0xff]
      %v878 = vld [vmem:[%s863 + $0x70] sm:$0xff]
      %v879 = vld [vmem:[%s863 + $0x78] sm:$0xff]
      %v880 = vld [vmem:[%s863 + $0x80] sm:$0xff]
      %v881 = vld [vmem:[%s863 + $0x88] sm:$0xff]
      %v882 = vld [vmem:[%s863 + $0x90] sm:$0xff]
      %v883 = vld [vmem:[%s863 + $0x98] sm:$0xff]
      %v884 = vld [vmem:[%s863 + $0xa0] sm:$0xff]
      %v885 = vld [vmem:[%s863 + $0xa8] sm:$0xff]
      %v886 = vld [vmem:[%s863 + $0xb0] sm:$0xff]
      %v887 = vld [vmem:[%s863 + $0xb8] sm:$0xff]
      %v888 = vld [vmem:[%s863 + $0xc0] sm:$0xff]
      %v889 = vld [vmem:[%s863 + $0xc8] sm:$0xff]
      %v890 = vld [vmem:[%s863 + $0xd0] sm:$0xff]
      %v891 = vld [vmem:[%s863 + $0xd8] sm:$0xff]
      %v892 = vld [vmem:[%s863 + $0xe0] sm:$0xff]
      %v893 = vld [vmem:[%s863 + $0xe8] sm:$0xff]
      %v894 = vld [vmem:[%s863 + $0xf0] sm:$0xff]
      %v895 = vld [vmem:[%s863 + $0xf8] sm:$0xff]
      %s896 = scalar_lea.vmem %s2, 16
      %v897 = vld [vmem:[%s896] sm:$0xff]
      %v898 = vld [vmem:[%s896 + $0x8] sm:$0xf]
      %vm899 = vcmask 97280
      %v901 = vsel %vm899, %v864, 0
      %v904 = vsel %vm899, %v865, 0
      %v907 = vsel %vm899, %v866, 0
      %v910 = vsel %vm899, %v867, 0
      %v913 = vsel %vm899, %v868, 0
      %v916 = vsel %vm899, %v869, 0
      %v919 = vsel %vm899, %v870, 0
      %v922 = vsel %vm899, %v871, 0
      %v925 = vsel %vm899, %v872, 0
      %v928 = vsel %vm899, %v873, 0
      %v931 = vsel %vm899, %v874, 0
      %v934 = vsel %vm899, %v875, 0
      %v937 = vsel %vm899, %v876, 0
      %v940 = vsel %vm899, %v877, 0
      %v943 = vsel %vm899, %v878, 0
      %v946 = vsel %vm899, %v879, 0
      %v949 = vsel %vm899, %v880, 0
      %v952 = vsel %vm899, %v881, 0
      %v955 = vsel %vm899, %v882, 0
      %v958 = vsel %vm899, %v883, 0
      %v961 = vsel %vm899, %v884, 0
      %v964 = vsel %vm899, %v885, 0
      %v967 = vsel %vm899, %v886, 0
      %v970 = vsel %vm899, %v887, 0
      %v973 = vsel %vm899, %v888, 0
      %v976 = vsel %vm899, %v889, 0
      %v979 = vsel %vm899, %v890, 0
      %v982 = vsel %vm899, %v891, 0
      %v985 = vsel %vm899, %v892, 0
      %v988 = vsel %vm899, %v893, 0
      %v991 = vsel %vm899, %v894, 0
      %v994 = vsel %vm899, %v895, 0
      %vm996 = vcmask 1043456
      %v998 = vsel %vm996, %v898, 0
      %1000 = vmatprep.subr.mxu0 0.0
      %1001 = vmatpush1.msra.mxu0 %v897
      %1002 = vmatprep.subr.mxu0 0.0
      %1003 = vmatpush1.msra.mxu0 %v998
      %1004 = vmatprep.subr.mxu0 0.0
      %1005 = vmatpush1.msra.mxu0 0.0
      %1006 = vmatprep.subr.mxu0 0.0
      %1007 = vmatpush1.msra.mxu0 0.0
      %1008 = vmatprep.subr.mxu0 0.0
      %1009 = vmatpush1.msra.mxu0 0.0
      %1010 = vmatprep.subr.mxu0 0.0
      %1011 = vmatpush1.msra.mxu0 0.0
      %1012 = vmatprep.subr.mxu0 0.0
      %1013 = vmatpush1.msra.mxu0 0.0
      %1014 = vmatprep.subr.mxu0 0.0
      %1015 = vmatpush1.msra.mxu0 0.0
      %1016 = vmatprep.subr.mxu0 0.0
      %1017 = vmatpush1.msra.mxu0 0.0
      %1018 = vmatprep.subr.mxu0 0.0
      %1019 = vmatpush1.msra.mxu0 0.0
      %1020 = vmatprep.subr.mxu0 0.0
      %1021 = vmatpush1.msra.mxu0 0.0
      %1022 = vmatprep.subr.mxu0 0.0
      %1023 = vmatpush1.msra.mxu0 0.0
      %1024 = vmatprep.subr.mxu0 0.0
      %1025 = vmatpush1.msra.mxu0 0.0
      %1026 = vmatprep.subr.mxu0 0.0
      %1027 = vmatpush1.msra.mxu0 0.0
      %1028 = vmatprep.subr.mxu0 0.0
      %1029 = vmatpush1.msra.mxu0 0.0
      %1030 = vmatprep.subr.mxu0 0.0
      %1031 = vmatpush1.msra.mxu0 0.0
      %1032 = vmatprep.subr.mxu0 0.0
      %1033 = vmatpush1.msra.mxu0 0.0
      %1034 = vmatprep.subr.mxu0 0.0
      %1035 = vmatpush1.msra.mxu0 0.0
      %1036 = vmatprep.subr.mxu0 0.0
      %1037 = vmatpush1.msra.mxu0 0.0
      %1038 = vmatprep.subr.mxu0 0.0
      %1039 = vmatpush1.msra.mxu0 0.0
      %1040 = vmatprep.subr.mxu0 0.0
      %1041 = vmatpush1.msra.mxu0 0.0
      %1042 = vmatprep.subr.mxu0 0.0
      %1043 = vmatpush1.msra.mxu0 0.0
      %1044 = vmatprep.subr.mxu0 0.0
      %1045 = vmatpush1.msra.mxu0 0.0
      %1046 = vmatprep.subr.mxu0 0.0
      %1047 = vmatpush1.msra.mxu0 0.0
      %1048 = vmatprep.subr.mxu0 0.0
      %1049 = vmatpush1.msra.mxu0 0.0
      %1050 = vmatprep.subr.mxu0 0.0
      %1051 = vmatpush1.msra.mxu0 0.0
      %1052 = vmatprep.subr.mxu0 0.0
      %1053 = vmatpush1.msra.mxu0 0.0
      %1054 = vmatprep.subr.mxu0 0.0
      %1055 = vmatpush1.msra.mxu0 0.0
      %1056 = vmatprep.subr.mxu0 0.0
      %1057 = vmatpush1.msra.mxu0 0.0
      %1058 = vmatprep.subr.mxu0 0.0
      %1059 = vmatpush1.msra.mxu0 0.0
      %1060 = vmatprep.subr.mxu0 0.0
      %1061 = vmatpush1.msra.mxu0 0.0
      %1062 = vmatprep.subr.mxu0 0.0
      %1063 = vmatpush1.msra.mxu0 0.0
      %1064 = vmatprep.mubr.f32.mxu0 0.0
      %1065 = vmatmul.mubr.f32.gmra.mrb[0].mxu0 %v901
      %v1066 = vpop.f32.mrb[0].mxu0
      %v1067 = vadd.f32 0.0, %v1066
      %v1068 = vpop.f32.mrb[0].mxu0
      %1069 = vmatprep.mubr.f32.mxu0 0.0
      %1070 = vmatmul.mubr.f32.gmra.mrb[0].mxu0 %v904
      %v1071 = vpop.f32.mrb[0].mxu0
      %v1072 = vadd.f32 0.0, %v1071
      %v1073 = vpop.f32.mrb[0].mxu0
      %1074 = vmatprep.mubr.f32.mxu0 0.0
      %1075 = vmatmul.mubr.f32.gmra.mrb[0].mxu0 %v907
      %v1076 = vpop.f32.mrb[0].mxu0
      %v1077 = vadd.f32 0.0, %v1076
      %v1078 = vpop.f32.mrb[0].mxu0
      %1079 = vmatprep.mubr.f32.mxu0 0.0
      %1080 = vmatmul.mubr.f32.gmra.mrb[0].mxu0 %v910
      %v1081 = vpop.f32.mrb[0].mxu0
      %v1082 = vadd.f32 0.0, %v1081
      %v1083 = vpop.f32.mrb[0].mxu0
      %1084 = vmatprep.mubr.f32.mxu0 0.0
      %1085 = vmatmul.mubr.f32.gmra.mrb[0].mxu0 %v913
      %v1086 = vpop.f32.mrb[0].mxu0
      %v1087 = vadd.f32 0.0, %v1086
      %v1088 = vpop.f32.mrb[0].mxu0
      %1089 = vmatprep.mubr.f32.mxu0 0.0
      %1090 = vmatmul.mubr.f32.gmra.mrb[0].mxu0 %v916
      %v1091 = vpop.f32.mrb[0].mxu0
      %v1092 = vadd.f32 0.0, %v1091
      %v1093 = vpop.f32.mrb[0].mxu0
      %1094 = vmatprep.mubr.f32.mxu0 0.0
      %1095 = vmatmul.mubr.f32.gmra.mrb[0].mxu0 %v919
      %v1096 = vpop.f32.mrb[0].mxu0
      %v1097 = vadd.f32 0.0, %v1096
      %v1098 = vpop.f32.mrb[0].mxu0
      %1099 = vmatprep.mubr.f32.mxu0 0.0
      %1100 = vmatmul.mubr.f32.gmra.mrb[0].mxu0 %v922
      %v1101 = vpop.f32.mrb[0].mxu0
      %v1102 = vadd.f32 0.0, %v1101
      %v1103 = vpop.f32.mrb[0].mxu0
      %1104 = vmatprep.mubr.f32.mxu0 0.0
      %1105 = vmatmul.mubr.f32.gmra.mrb[0].mxu0 %v925
      %v1106 = vpop.f32.mrb[0].mxu0
      %v1107 = vadd.f32 0.0, %v1106
      %v1108 = vpop.f32.mrb[0].mxu0
      %1109 = vmatprep.mubr.f32.mxu0 0.0
      %1110 = vmatmul.mubr.f32.gmra.mrb[0].mxu0 %v928
      %v1111 = vpop.f32.mrb[0].mxu0
      %v1112 = vadd.f32 0.0, %v1111
      %v1113 = vpop.f32.mrb[0].mxu0
      %1114 = vmatprep.mubr.f32.mxu0 0.0
      %1115 = vmatmul.mubr.f32.gmra.mrb[0].mxu0 %v931
      %v1116 = vpop.f32.mrb[0].mxu0
      %v1117 = vadd.f32 0.0, %v1116
      %v1118 = vpop.f32.mrb[0].mxu0
      %1119 = vmatprep.mubr.f32.mxu0 0.0
      %1120 = vmatmul.mubr.f32.gmra.mrb[0].mxu0 %v934
      %v1121 = vpop.f32.mrb[0].mxu0
      %v1122 = vadd.f32 0.0, %v1121
      %v1123 = vpop.f32.mrb[0].mxu0
      %1124 = vmatprep.mubr.f32.mxu0 0.0
      %1125 = vmatmul.mubr.f32.gmra.mrb[0].mxu0 %v937
      %v1126 = vpop.f32.mrb[0].mxu0
      %v1127 = vadd.f32 0.0, %v1126
      %v1128 = vpop.f32.mrb[0].mxu0
      %1129 = vmatprep.mubr.f32.mxu0 0.0
      %1130 = vmatmul.mubr.f32.gmra.mrb[0].mxu0 %v940
      %v1131 = vpop.f32.mrb[0].mxu0
      %v1132 = vadd.f32 0.0, %v1131
      %v1133 = vpop.f32.mrb[0].mxu0
      %1134 = vmatprep.mubr.f32.mxu0 0.0
      %1135 = vmatmul.mubr.f32.gmra.mrb[0].mxu0 %v943
      %v1136 = vpop.f32.mrb[0].mxu0
      %v1137 = vadd.f32 0.0, %v1136
      %v1138 = vpop.f32.mrb[0].mxu0
      %1139 = vmatprep.mubr.f32.mxu0 0.0
      %1140 = vmatmul.mubr.f32.gmra.mrb[0].mxu0 %v946
      %v1141 = vpop.f32.mrb[0].mxu0
      %v1142 = vadd.f32 0.0, %v1141
      %v1143 = vpop.f32.mrb[0].mxu0
      %1144 = vmatprep.mubr.f32.mxu0 0.0
      %1145 = vmatmul.mubr.f32.gmra.mrb[0].mxu0 %v949
      %v1146 = vpop.f32.mrb[0].mxu0
      %v1147 = vadd.f32 0.0, %v1146
      %v1148 = vpop.f32.mrb[0].mxu0
      %1149 = vmatprep.mubr.f32.mxu0 0.0
      %1150 = vmatmul.mubr.f32.gmra.mrb[0].mxu0 %v952
      %v1151 = vpop.f32.mrb[0].mxu0
      %v1152 = vadd.f32 0.0, %v1151
      %v1153 = vpop.f32.mrb[0].mxu0
      %1154 = vmatprep.mubr.f32.mxu0 0.0
      %1155 = vmatmul.mubr.f32.gmra.mrb[0].mxu0 %v955
      %v1156 = vpop.f32.mrb[0].mxu0
      %v1157 = vadd.f32 0.0, %v1156
      %v1158 = vpop.f32.mrb[0].mxu0
      %1159 = vmatprep.mubr.f32.mxu0 0.0
      %1160 = vmatmul.mubr.f32.gmra.mrb[0].mxu0 %v958
      %v1161 = vpop.f32.mrb[0].mxu0
      %v1162 = vadd.f32 0.0, %v1161
      %v1163 = vpop.f32.mrb[0].mxu0
      %1164 = vmatprep.mubr.f32.mxu0 0.0
      %1165 = vmatmul.mubr.f32.gmra.mrb[0].mxu0 %v961
      %v1166 = vpop.f32.mrb[0].mxu0
      %v1167 = vadd.f32 0.0, %v1166
      %v1168 = vpop.f32.mrb[0].mxu0
      %1169 = vmatprep.mubr.f32.mxu0 0.0
      %1170 = vmatmul.mubr.f32.gmra.mrb[0].mxu0 %v964
      %v1171 = vpop.f32.mrb[0].mxu0
      %v1172 = vadd.f32 0.0, %v1171
      %v1173 = vpop.f32.mrb[0].mxu0
      %1174 = vmatprep.mubr.f32.mxu0 0.0
      %1175 = vmatmul.mubr.f32.gmra.mrb[0].mxu0 %v967
      %v1176 = vpop.f32.mrb[0].mxu0
      %v1177 = vadd.f32 0.0, %v1176
      %v1178 = vpop.f32.mrb[0].mxu0
      %1179 = vmatprep.mubr.f32.mxu0 0.0
      %1180 = vmatmul.mubr.f32.gmra.mrb[0].mxu0 %v970
      %v1181 = vpop.f32.mrb[0].mxu0
      %v1182 = vadd.f32 0.0, %v1181
      %v1183 = vpop.f32.mrb[0].mxu0
      %1184 = vmatprep.mubr.f32.mxu0 0.0
      %1185 = vmatmul.mubr.f32.gmra.mrb[0].mxu0 %v973
      %v1186 = vpop.f32.mrb[0].mxu0
      %v1187 = vadd.f32 0.0, %v1186
      %v1188 = vpop.f32.mrb[0].mxu0
      %1189 = vmatprep.mubr.f32.mxu0 0.0
      %1190 = vmatmul.mubr.f32.gmra.mrb[0].mxu0 %v976
      %v1191 = vpop.f32.mrb[0].mxu0
      %v1192 = vadd.f32 0.0, %v1191
      %v1193 = vpop.f32.mrb[0].mxu0
      %1194 = vmatprep.mubr.f32.mxu0 0.0
      %1195 = vmatmul.mubr.f32.gmra.mrb[0].mxu0 %v979
      %v1196 = vpop.f32.mrb[0].mxu0
      %v1197 = vadd.f32 0.0, %v1196
      %v1198 = vpop.f32.mrb[0].mxu0
      %1199 = vmatprep.mubr.f32.mxu0 0.0
      %1200 = vmatmul.mubr.f32.gmra.mrb[0].mxu0 %v982
      %v1201 = vpop.f32.mrb[0].mxu0
      %v1202 = vadd.f32 0.0, %v1201
      %v1203 = vpop.f32.mrb[0].mxu0
      %1204 = vmatprep.mubr.f32.mxu0 0.0
      %1205 = vmatmul.mubr.f32.gmra.mrb[0].mxu0 %v985
      %v1206 = vpop.f32.mrb[0].mxu0
      %v1207 = vadd.f32 0.0, %v1206
      %v1208 = vpop.f32.mrb[0].mxu0
      %1209 = vmatprep.mubr.f32.mxu0 0.0
      %1210 = vmatmul.mubr.f32.gmra.mrb[0].mxu0 %v988
      %v1211 = vpop.f32.mrb[0].mxu0
      %v1212 = vadd.f32 0.0, %v1211
      %v1213 = vpop.f32.mrb[0].mxu0
      %1214 = vmatprep.mubr.f32.mxu0 0.0
      %1215 = vmatmul.mubr.f32.gmra.mrb[0].mxu0 %v991
      %v1216 = vpop.f32.mrb[0].mxu0
      %v1217 = vadd.f32 0.0, %v1216
      %v1218 = vpop.f32.mrb[0].mxu0
      %1219 = vmatprep.mubr.f32.mxu0 0.0
      %1220 = vmatmul.mubr.f32.gmra.mrb[0].mxu0 %v994
      %v1221 = vpop.f32.mrb[0].mxu0
      %v1222 = vadd.f32 0.0, %v1221
      %v1223 = vpop.f32.mrb[0].mxu0
      %1224 = vdwg.mxu0
      %v1226 = vsel %vm899, %v829, 0
      %v1229 = vsel %vm899, %v830, 0
      %v1232 = vsel %vm899, %v831, 0
      %v1235 = vsel %vm899, %v832, 0
      %v1238 = vsel %vm899, %v833, 0
      %v1241 = vsel %vm899, %v834, 0
      %v1244 = vsel %vm899, %v835, 0
      %v1247 = vsel %vm899, %v836, 0
      %v1250 = vsel %vm899, %v837, 0
      %v1253 = vsel %vm899, %v838, 0
      %v1256 = vsel %vm899, %v839, 0
      %v1259 = vsel %vm899, %v840, 0
      %v1262 = vsel %vm899, %v841, 0
      %v1265 = vsel %vm899, %v842, 0
      %v1268 = vsel %vm899, %v843, 0
      %v1271 = vsel %vm899, %v844, 0
      %v1274 = vsel %vm899, %v845, 0
      %v1277 = vsel %vm899, %v846, 0
      %v1280 = vsel %vm899, %v847, 0
      %v1283 = vsel %vm899, %v848, 0
      %v1286 = vsel %vm899, %v849, 0
      %v1289 = vsel %vm899, %v850, 0
      %v1292 = vsel %vm899, %v851, 0
      %v1295 = vsel %vm899, %v852, 0
      %v1298 = vsel %vm899, %v853, 0
      %v1301 = vsel %vm899, %v854, 0
      %v1304 = vsel %vm899, %v855, 0
      %v1307 = vsel %vm899, %v856, 0
      %v1310 = vsel %vm899, %v857, 0
      %v1313 = vsel %vm899, %v858, 0
      %v1316 = vsel %vm899, %v859, 0
      %v1319 = vsel %vm899, %v860, 0
      %v1322 = vsel %vm996, %v862, 0
      %1324 = vmatprep.subr.mxu0 0.0
      %1325 = vmatpush1.msra.mxu0 %v861
      %1326 = vmatprep.subr.mxu0 0.0
      %1327 = vmatpush1.msra.mxu0 %v1322
      %1328 = vmatprep.subr.mxu0 0.0
      %1329 = vmatpush1.msra.mxu0 0.0
      %1330 = vmatprep.subr.mxu0 0.0
      %1331 = vmatpush1.msra.mxu0 0.0
      %1332 = vmatprep.subr.mxu0 0.0
      %1333 = vmatpush1.msra.mxu0 0.0
      %1334 = vmatprep.subr.mxu0 0.0
      %1335 = vmatpush1.msra.mxu0 0.0
      %1336 = vmatprep.subr.mxu0 0.0
      %1337 = vmatpush1.msra.mxu0 0.0
      %1338 = vmatprep.subr.mxu0 0.0
      %1339 = vmatpush1.msra.mxu0 0.0
      %1340 = vmatprep.subr.mxu0 0.0
      %1341 = vmatpush1.msra.mxu0 0.0
      %1342 = vmatprep.subr.mxu0 0.0
      %1343 = vmatpush1.msra.mxu0 0.0
      %1344 = vmatprep.subr.mxu0 0.0
      %1345 = vmatpush1.msra.mxu0 0.0
      %1346 = vmatprep.subr.mxu0 0.0
      %1347 = vmatpush1.msra.mxu0 0.0
      %1348 = vmatprep.subr.mxu0 0.0
      %1349 = vmatpush1.msra.mxu0 0.0
      %1350 = vmatprep.subr.mxu0 0.0
      %1351 = vmatpush1.msra.mxu0 0.0
      %1352 = vmatprep.subr.mxu0 0.0
      %1353 = vmatpush1.msra.mxu0 0.0
      %1354 = vmatprep.subr.mxu0 0.0
      %1355 = vmatpush1.msra.mxu0 0.0
      %1356 = vmatprep.subr.mxu0 0.0
      %1357 = vmatpush1.msra.mxu0 0.0
      %1358 = vmatprep.subr.mxu0 0.0
      %1359 = vmatpush1.msra.mxu0 0.0
      %1360 = vmatprep.subr.mxu0 0.0
      %1361 = vmatpush1.msra.mxu0 0.0
      %1362 = vmatprep.subr.mxu0 0.0
      %1363 = vmatpush1.msra.mxu0 0.0
      %1364 = vmatprep.subr.mxu0 0.0
      %1365 = vmatpush1.msra.mxu0 0.0
      %1366 = vmatprep.subr.mxu0 0.0
      %1367 = vmatpush1.msra.mxu0 0.0
      %1368 = vmatprep.subr.mxu0 0.0
      %1369 = vmatpush1.msra.mxu0 0.0
      %1370 = vmatprep.subr.mxu0 0.0
      %1371 = vmatpush1.msra.mxu0 0.0
      %1372 = vmatprep.subr.mxu0 0.0
      %1373 = vmatpush1.msra.mxu0 0.0
      %1374 = vmatprep.subr.mxu0 0.0
      %1375 = vmatpush1.msra.mxu0 0.0
      %1376 = vmatprep.subr.mxu0 0.0
      %1377 = vmatpush1.msra.mxu0 0.0
      %1378 = vmatprep.subr.mxu0 0.0
      %1379 = vmatpush1.msra.mxu0 0.0
      %1380 = vmatprep.subr.mxu0 0.0
      %1381 = vmatpush1.msra.mxu0 0.0
      %1382 = vmatprep.subr.mxu0 0.0
      %1383 = vmatpush1.msra.mxu0 0.0
      %1384 = vmatprep.subr.mxu0 0.0
      %1385 = vmatpush1.msra.mxu0 0.0
      %1386 = vmatprep.subr.mxu0 0.0
      %1387 = vmatpush1.msra.mxu0 0.0
      %1388 = vmatprep.mubr.f32.mxu0 0.0
      %1389 = vmatmul.mubr.f32.gmra.mrb[0].mxu0 %v1226
      %v1390 = vpop.f32.mrb[0].mxu0
      %v1391 = vadd.f32 %v1067, %v1390
      %v1392 = vpop.f32.mrb[0].mxu0
      %1393 = vmatprep.mubr.f32.mxu0 0.0
      %1394 = vmatmul.mubr.f32.gmra.mrb[0].mxu0 %v1229
      %v1395 = vpop.f32.mrb[0].mxu0
      %v1396 = vadd.f32 %v1072, %v1395
      %v1397 = vpop.f32.mrb[0].mxu0
      %1398 = vmatprep.mubr.f32.mxu0 0.0
      %1399 = vmatmul.mubr.f32.gmra.mrb[0].mxu0 %v1232
      %v1400 = vpop.f32.mrb[0].mxu0
      %v1401 = vadd.f32 %v1077, %v1400
      %v1402 = vpop.f32.mrb[0].mxu0
      %1403 = vmatprep.mubr.f32.mxu0 0.0
      %1404 = vmatmul.mubr.f32.gmra.mrb[0].mxu0 %v1235
      %v1405 = vpop.f32.mrb[0].mxu0
      %v1406 = vadd.f32 %v1082, %v1405
      %v1407 = vpop.f32.mrb[0].mxu0
      %1408 = vmatprep.mubr.f32.mxu0 0.0
      %1409 = vmatmul.mubr.f32.gmra.mrb[0].mxu0 %v1238
      %v1410 = vpop.f32.mrb[0].mxu0
      %v1411 = vadd.f32 %v1087, %v1410
      %v1412 = vpop.f32.mrb[0].mxu0
      %1413 = vmatprep.mubr.f32.mxu0 0.0
      %1414 = vmatmul.mubr.f32.gmra.mrb[0].mxu0 %v1241
      %v1415 = vpop.f32.mrb[0].mxu0
      %v1416 = vadd.f32 %v1092, %v1415
      %v1417 = vpop.f32.mrb[0].mxu0
      %1418 = vmatprep.mubr.f32.mxu0 0.0
      %1419 = vmatmul.mubr.f32.gmra.mrb[0].mxu0 %v1244
      %v1420 = vpop.f32.mrb[0].mxu0
      %v1421 = vadd.f32 %v1097, %v1420
      %v1422 = vpop.f32.mrb[0].mxu0
      %1423 = vmatprep.mubr.f32.mxu0 0.0
      %1424 = vmatmul.mubr.f32.gmra.mrb[0].mxu0 %v1247
      %v1425 = vpop.f32.mrb[0].mxu0
      %v1426 = vadd.f32 %v1102, %v1425
      %v1427 = vpop.f32.mrb[0].mxu0
      %1428 = vmatprep.mubr.f32.mxu0 0.0
      %1429 = vmatmul.mubr.f32.gmra.mrb[0].mxu0 %v1250
      %v1430 = vpop.f32.mrb[0].mxu0
      %v1431 = vadd.f32 %v1107, %v1430
      %v1432 = vpop.f32.mrb[0].mxu0
      %1433 = vmatprep.mubr.f32.mxu0 0.0
      %1434 = vmatmul.mubr.f32.gmra.mrb[0].mxu0 %v1253
      %v1435 = vpop.f32.mrb[0].mxu0
      %v1436 = vadd.f32 %v1112, %v1435
      %v1437 = vpop.f32.mrb[0].mxu0
      %1438 = vmatprep.mubr.f32.mxu0 0.0
      %1439 = vmatmul.mubr.f32.gmra.mrb[0].mxu0 %v1256
      %v1440 = vpop.f32.mrb[0].mxu0
      %v1441 = vadd.f32 %v1117, %v1440
      %v1442 = vpop.f32.mrb[0].mxu0
      %1443 = vmatprep.mubr.f32.mxu0 0.0
      %1444 = vmatmul.mubr.f32.gmra.mrb[0].mxu0 %v1259
      %v1445 = vpop.f32.mrb[0].mxu0
      %v1446 = vadd.f32 %v1122, %v1445
      %v1447 = vpop.f32.mrb[0].mxu0
      %1448 = vmatprep.mubr.f32.mxu0 0.0
      %1449 = vmatmul.mubr.f32.gmra.mrb[0].mxu0 %v1262
      %v1450 = vpop.f32.mrb[0].mxu0
      %v1451 = vadd.f32 %v1127, %v1450
      %v1452 = vpop.f32.mrb[0].mxu0
      %1453 = vmatprep.mubr.f32.mxu0 0.0
      %1454 = vmatmul.mubr.f32.gmra.mrb[0].mxu0 %v1265
      %v1455 = vpop.f32.mrb[0].mxu0
      %v1456 = vadd.f32 %v1132, %v1455
      %v1457 = vpop.f32.mrb[0].mxu0
      %1458 = vmatprep.mubr.f32.mxu0 0.0
      %1459 = vmatmul.mubr.f32.gmra.mrb[0].mxu0 %v1268
      %v1460 = vpop.f32.mrb[0].mxu0
      %v1461 = vadd.f32 %v1137, %v1460
      %v1462 = vpop.f32.mrb[0].mxu0
      %1463 = vmatprep.mubr.f32.mxu0 0.0
      %1464 = vmatmul.mubr.f32.gmra.mrb[0].mxu0 %v1271
      %v1465 = vpop.f32.mrb[0].mxu0
      %v1466 = vadd.f32 %v1142, %v1465
      %v1467 = vpop.f32.mrb[0].mxu0
      %1468 = vmatprep.mubr.f32.mxu0 0.0
      %1469 = vmatmul.mubr.f32.gmra.mrb[0].mxu0 %v1274
      %v1470 = vpop.f32.mrb[0].mxu0
      %v1471 = vadd.f32 %v1147, %v1470
      %v1472 = vpop.f32.mrb[0].mxu0
      %1473 = vmatprep.mubr.f32.mxu0 0.0
      %1474 = vmatmul.mubr.f32.gmra.mrb[0].mxu0 %v1277
      %v1475 = vpop.f32.mrb[0].mxu0
      %v1476 = vadd.f32 %v1152, %v1475
      %v1477 = vpop.f32.mrb[0].mxu0
      %1478 = vmatprep.mubr.f32.mxu0 0.0
      %1479 = vmatmul.mubr.f32.gmra.mrb[0].mxu0 %v1280
      %v1480 = vpop.f32.mrb[0].mxu0
      %v1481 = vadd.f32 %v1157, %v1480
      %v1482 = vpop.f32.mrb[0].mxu0
      %1483 = vmatprep.mubr.f32.mxu0 0.0
      %1484 = vmatmul.mubr.f32.gmra.mrb[0].mxu0 %v1283
      %v1485 = vpop.f32.mrb[0].mxu0
      %v1486 = vadd.f32 %v1162, %v1485
      %v1487 = vpop.f32.mrb[0].mxu0
      %1488 = vmatprep.mubr.f32.mxu0 0.0
      %1489 = vmatmul.mubr.f32.gmra.mrb[0].mxu0 %v1286
      %v1490 = vpop.f32.mrb[0].mxu0
      %v1491 = vadd.f32 %v1167, %v1490
      %v1492 = vpop.f32.mrb[0].mxu0
      %1493 = vmatprep.mubr.f32.mxu0 0.0
      %1494 = vmatmul.mubr.f32.gmra.mrb[0].mxu0 %v1289
      %v1495 = vpop.f32.mrb[0].mxu0
      %v1496 = vadd.f32 %v1172, %v1495
      %v1497 = vpop.f32.mrb[0].mxu0
      %1498 = vmatprep.mubr.f32.mxu0 0.0
      %1499 = vmatmul.mubr.f32.gmra.mrb[0].mxu0 %v1292
      %v1500 = vpop.f32.mrb[0].mxu0
      %v1501 = vadd.f32 %v1177, %v1500
      %v1502 = vpop.f32.mrb[0].mxu0
      %1503 = vmatprep.mubr.f32.mxu0 0.0
      %1504 = vmatmul.mubr.f32.gmra.mrb[0].mxu0 %v1295
      %v1505 = vpop.f32.mrb[0].mxu0
      %v1506 = vadd.f32 %v1182, %v1505
      %v1507 = vpop.f32.mrb[0].mxu0
      %1508 = vmatprep.mubr.f32.mxu0 0.0
      %1509 = vmatmul.mubr.f32.gmra.mrb[0].mxu0 %v1298
      %v1510 = vpop.f32.mrb[0].mxu0
      %v1511 = vadd.f32 %v1187, %v1510
      %v1512 = vpop.f32.mrb[0].mxu0
      %1513 = vmatprep.mubr.f32.mxu0 0.0
      %1514 = vmatmul.mubr.f32.gmra.mrb[0].mxu0 %v1301
      %v1515 = vpop.f32.mrb[0].mxu0
      %v1516 = vadd.f32 %v1192, %v1515
      %v1517 = vpop.f32.mrb[0].mxu0
      %1518 = vmatprep.mubr.f32.mxu0 0.0
      %1519 = vmatmul.mubr.f32.gmra.mrb[0].mxu0 %v1304
      %v1520 = vpop.f32.mrb[0].mxu0
      %v1521 = vadd.f32 %v1197, %v1520
      %v1522 = vpop.f32.mrb[0].mxu0
      %1523 = vmatprep.mubr.f32.mxu0 0.0
      %1524 = vmatmul.mubr.f32.gmra.mrb[0].mxu0 %v1307
      %v1525 = vpop.f32.mrb[0].mxu0
      %v1526 = vadd.f32 %v1202, %v1525
      %v1527 = vpop.f32.mrb[0].mxu0
      %1528 = vmatprep.mubr.f32.mxu0 0.0
      %1529 = vmatmul.mubr.f32.gmra.mrb[0].mxu0 %v1310
      %v1530 = vpop.f32.mrb[0].mxu0
      %v1531 = vadd.f32 %v1207, %v1530
      %v1532 = vpop.f32.mrb[0].mxu0
      %1533 = vmatprep.mubr.f32.mxu0 0.0
      %1534 = vmatmul.mubr.f32.gmra.mrb[0].mxu0 %v1313
      %v1535 = vpop.f32.mrb[0].mxu0
      %v1536 = vadd.f32 %v1212, %v1535
      %v1537 = vpop.f32.mrb[0].mxu0
      %1538 = vmatprep.mubr.f32.mxu0 0.0
      %1539 = vmatmul.mubr.f32.gmra.mrb[0].mxu0 %v1316
      %v1540 = vpop.f32.mrb[0].mxu0
      %v1541 = vadd.f32 %v1217, %v1540
      %v1542 = vpop.f32.mrb[0].mxu0
      %1543 = vmatprep.mubr.f32.mxu0 0.0
      %1544 = vmatmul.mubr.f32.gmra.mrb[0].mxu0 %v1319
      %v1545 = vpop.f32.mrb[0].mxu0
      %v1546 = vadd.f32 %v1222, %v1545
      %v1547 = vpop.f32.mrb[0].mxu0
      %1548 = vdwg.mxu0
      %s1549 = scalar_lea.vmem [#allocation2], 32
      %v1550 = vld [vmem:[%s1549] sm:$0xff]
      %v1551 = vld [vmem:[%s1549 + $0x8] sm:$0xff]
      %v1552 = vld [vmem:[%s1549 + $0x10] sm:$0xff]
      %v1553 = vld [vmem:[%s1549 + $0x18] sm:$0xff]
      %v1554 = vld [vmem:[%s1549 + $0x20] sm:$0xff]
      %v1555 = vld [vmem:[%s1549 + $0x28] sm:$0xff]
      %v1556 = vld [vmem:[%s1549 + $0x30] sm:$0xff]
      %v1557 = vld [vmem:[%s1549 + $0x38] sm:$0xff]
      %v1558 = vld [vmem:[%s1549 + $0x40] sm:$0xff]
      %v1559 = vld [vmem:[%s1549 + $0x48] sm:$0xff]
      %v1560 = vld [vmem:[%s1549 + $0x50] sm:$0xff]
      %v1561 = vld [vmem:[%s1549 + $0x58] sm:$0xff]
      %v1562 = vld [vmem:[%s1549 + $0x60] sm:$0xff]
      %v1563 = vld [vmem:[%s1549 + $0x68] sm:$0xff]
      %v1564 = vld [vmem:[%s1549 + $0x70] sm:$0xff]
      %v1565 = vld [vmem:[%s1549 + $0x78] sm:$0xff]
      %v1566 = vld [vmem:[%s1549 + $0x80] sm:$0xff]
      %v1567 = vld [vmem:[%s1549 + $0x88] sm:$0xff]
      %v1568 = vld [vmem:[%s1549 + $0x90] sm:$0xff]
      %v1569 = vld [vmem:[%s1549 + $0x98] sm:$0xff]
      %v1570 = vld [vmem:[%s1549 + $0xa0] sm:$0xff]
      %v1571 = vld [vmem:[%s1549 + $0xa8] sm:$0xff]
      %v1572 = vld [vmem:[%s1549 + $0xb0] sm:$0xff]
      %v1573 = vld [vmem:[%s1549 + $0xb8] sm:$0xff]
      %v1574 = vld [vmem:[%s1549 + $0xc0] sm:$0xff]
      %v1575 = vld [vmem:[%s1549 + $0xc8] sm:$0xff]
      %v1576 = vld [vmem:[%s1549 + $0xd0] sm:$0xff]
      %v1577 = vld [vmem:[%s1549 + $0xd8] sm:$0xff]
      %v1578 = vld [vmem:[%s1549 + $0xe0] sm:$0xff]
      %v1579 = vld [vmem:[%s1549 + $0xe8] sm:$0xff]
      %v1580 = vld [vmem:[%s1549 + $0xf0] sm:$0xff]
      %v1581 = vld [vmem:[%s1549 + $0xf8] sm:$0xff]
      %s1582 = scalar_lea.vmem %s2, 32
      %v1583 = vld [vmem:[%s1582] sm:$0xff]
      %v1584 = vld [vmem:[%s1582 + $0x8] sm:$0xf]
      %v1586 = vsel %vm899, %v1550, 0
      %v1589 = vsel %vm899, %v1551, 0
      %v1592 = vsel %vm899, %v1552, 0
      %v1595 = vsel %vm899, %v1553, 0
      %v1598 = vsel %vm899, %v1554, 0
      %v1601 = vsel %vm899, %v1555, 0
      %v1604 = vsel %vm899, %v1556, 0
      %v1607 = vsel %vm899, %v1557, 0
      %v1610 = vsel %vm899, %v1558, 0
      %v1613 = vsel %vm899, %v1559, 0
      %v1616 = vsel %vm899, %v1560, 0
      %v1619 = vsel %vm899, %v1561, 0
      %v1622 = vsel %vm899, %v1562, 0
      %v1625 = vsel %vm899, %v1563, 0
      %v1628 = vsel %vm899, %v1564, 0
      %v1631 = vsel %vm899, %v1565, 0
      %v1634 = vsel %vm899, %v1566, 0
      %v1637 = vsel %vm899, %v1567, 0
      %v1640 = vsel %vm899, %v1568, 0
      %v1643 = vsel %vm899, %v1569, 0
      %v1646 = vsel %vm899, %v1570, 0
      %v1649 = vsel %vm899, %v1571, 0
      %v1652 = vsel %vm899, %v1572, 0
      %v1655 = vsel %vm899, %v1573, 0
      %v1658 = vsel %vm899, %v1574, 0
      %v1661 = vsel %vm899, %v1575, 0
      %v1664 = vsel %vm899, %v1576, 0
      %v1667 = vsel %vm899, %v1577, 0
      %v1670 = vsel %vm899, %v1578, 0
      %v1673 = vsel %vm899, %v1579, 0
      %v1676 = vsel %vm899, %v1580, 0
      %v1679 = vsel %vm899, %v1581, 0
      %v1682 = vsel %vm996, %v1584, 0
      %1684 = vmatprep.subr.mxu0 0.0
      %1685 = vmatpush1.msra.mxu0 %v1583
      %1686 = vmatprep.subr.mxu0 0.0
      %1687 = vmatpush1.msra.mxu0 %v1682
      %1688 = vmatprep.subr.mxu0 0.0
      %1689 = vmatpush1.msra.mxu0 0.0
      %1690 = vmatprep.subr.mxu0 0.0
      %1691 = vmatpush1.msra.mxu0 0.0
      %1692 = vmatprep.subr.mxu0 0.0
      %1693 = vmatpush1.msra.mxu0 0.0
      %1694 = vmatprep.subr.mxu0 0.0
      %1695 = vmatpush1.msra.mxu0 0.0
      %1696 = vmatprep.subr.mxu0 0.0
      %1697 = vmatpush1.msra.mxu0 0.0
      %1698 = vmatprep.subr.mxu0 0.0
      %1699 = vmatpush1.msra.mxu0 0.0
      %1700 = vmatprep.subr.mxu0 0.0
      %1701 = vmatpush1.msra.mxu0 0.0
      %1702 = vmatprep.subr.mxu0 0.0
      %1703 = vmatpush1.msra.mxu0 0.0
      %1704 = vmatprep.subr.mxu0 0.0
      %1705 = vmatpush1.msra.mxu0 0.0
      %1706 = vmatprep.subr.mxu0 0.0
      %1707 = vmatpush1.msra.mxu0 0.0
      %1708 = vmatprep.subr.mxu0 0.0
      %1709 = vmatpush1.msra.mxu0 0.0
      %1710 = vmatprep.subr.mxu0 0.0
      %1711 = vmatpush1.msra.mxu0 0.0
      %1712 = vmatprep.subr.mxu0 0.0
      %1713 = vmatpush1.msra.mxu0 0.0
      %1714 = vmatprep.subr.mxu0 0.0
      %1715 = vmatpush1.msra.mxu0 0.0
      %1716 = vmatprep.subr.mxu0 0.0
      %1717 = vmatpush1.msra.mxu0 0.0
      %1718 = vmatprep.subr.mxu0 0.0
      %1719 = vmatpush1.msra.mxu0 0.0
      %1720 = vmatprep.subr.mxu0 0.0
      %1721 = vmatpush1.msra.mxu0 0.0
      %1722 = vmatprep.subr.mxu0 0.0
      %1723 = vmatpush1.msra.mxu0 0.0
      %1724 = vmatprep.subr.mxu0 0.0
      %1725 = vmatpush1.msra.mxu0 0.0
      %1726 = vmatprep.subr.mxu0 0.0
      %1727 = vmatpush1.msra.mxu0 0.0
      %1728 = vmatprep.subr.mxu0 0.0
      %1729 = vmatpush1.msra.mxu0 0.0
      %1730 = vmatprep.subr.mxu0 0.0
      %1731 = vmatpush1.msra.mxu0 0.0
      %1732 = vmatprep.subr.mxu0 0.0
      %1733 = vmatpush1.msra.mxu0 0.0
      %1734 = vmatprep.subr.mxu0 0.0
      %1735 = vmatpush1.msra.mxu0 0.0
      %1736 = vmatprep.subr.mxu0 0.0
      %1737 = vmatpush1.msra.mxu0 0.0
      %1738 = vmatprep.subr.mxu0 0.0
      %1739 = vmatpush1.msra.mxu0 0.0
      %1740 = vmatprep.subr.mxu0 0.0
      %1741 = vmatpush1.msra.mxu0 0.0
      %1742 = vmatprep.subr.mxu0 0.0
      %1743 = vmatpush1.msra.mxu0 0.0
      %1744 = vmatprep.subr.mxu0 0.0
      %1745 = vmatpush1.msra.mxu0 0.0
      %1746 = vmatprep.subr.mxu0 0.0
      %1747 = vmatpush1.msra.mxu0 0.0
      %1748 = vmatprep.mubr.f32.mxu0 0.0
      %1749 = vmatmul.mubr.f32.gmra.mrb[0].mxu0 %v1586
      %v1750 = vpop.f32.mrb[0].mxu0
      %v1751 = vadd.f32 0.0, %v1750
      %v1752 = vpop.f32.mrb[0].mxu0
      %1753 = vmatprep.mubr.f32.mxu0 0.0
      %1754 = vmatmul.mubr.f32.gmra.mrb[0].mxu0 %v1589
      %v1755 = vpop.f32.mrb[0].mxu0
      %v1756 = vadd.f32 0.0, %v1755
      %v1757 = vpop.f32.mrb[0].mxu0
      %1758 = vmatprep.mubr.f32.mxu0 0.0
      %1759 = vmatmul.mubr.f32.gmra.mrb[0].mxu0 %v1592
      %v1760 = vpop.f32.mrb[0].mxu0
      %v1761 = vadd.f32 0.0, %v1760
      %v1762 = vpop.f32.mrb[0].mxu0
      %1763 = vmatprep.mubr.f32.mxu0 0.0
      %1764 = vmatmul.mubr.f32.gmra.mrb[0].mxu0 %v1595
      %v1765 = vpop.f32.mrb[0].mxu0
      %v1766 = vadd.f32 0.0, %v1765
      %v1767 = vpop.f32.mrb[0].mxu0
      %1768 = vmatprep.mubr.f32.mxu0 0.0
      %1769 = vmatmul.mubr.f32.gmra.mrb[0].mxu0 %v1598
      %v1770 = vpop.f32.mrb[0].mxu0
      %v1771 = vadd.f32 0.0, %v1770
      %v1772 = vpop.f32.mrb[0].mxu0
      %1773 = vmatprep.mubr.f32.mxu0 0.0
      %1774 = vmatmul.mubr.f32.gmra.mrb[0].mxu0 %v1601
      %v1775 = vpop.f32.mrb[0].mxu0
      %v1776 = vadd.f32 0.0, %v1775
      %v1777 = vpop.f32.mrb[0].mxu0
      %1778 = vmatprep.mubr.f32.mxu0 0.0
      %1779 = vmatmul.mubr.f32.gmra.mrb[0].mxu0 %v1604
      %v1780 = vpop.f32.mrb[0].mxu0
      %v1781 = vadd.f32 0.0, %v1780
      %v1782 = vpop.f32.mrb[0].mxu0
      %1783 = vmatprep.mubr.f32.mxu0 0.0
      %1784 = vmatmul.mubr.f32.gmra.mrb[0].mxu0 %v1607
      %v1785 = vpop.f32.mrb[0].mxu0
      %v1786 = vadd.f32 0.0, %v1785
      %v1787 = vpop.f32.mrb[0].mxu0
      %1788 = vmatprep.mubr.f32.mxu0 0.0
      %1789 = vmatmul.mubr.f32.gmra.mrb[0].mxu0 %v1610
      %v1790 = vpop.f32.mrb[0].mxu0
      %v1791 = vadd.f32 0.0, %v1790
      %v1792 = vpop.f32.mrb[0].mxu0
      %1793 = vmatprep.mubr.f32.mxu0 0.0
      %1794 = vmatmul.mubr.f32.gmra.mrb[0].mxu0 %v1613
      %v1795 = vpop.f32.mrb[0].mxu0
      %v1796 = vadd.f32 0.0, %v1795
      %v1797 = vpop.f32.mrb[0].mxu0
      %1798 = vmatprep.mubr.f32.mxu0 0.0
      %1799 = vmatmul.mubr.f32.gmra.mrb[0].mxu0 %v1616
      %v1800 = vpop.f32.mrb[0].mxu0
      %v1801 = vadd.f32 0.0, %v1800
      %v1802 = vpop.f32.mrb[0].mxu0
      %1803 = vmatprep.mubr.f32.mxu0 0.0
      %1804 = vmatmul.mubr.f32.gmra.mrb[0].mxu0 %v1619
      %v1805 = vpop.f32.mrb[0].mxu0
      %v1806 = vadd.f32 0.0, %v1805
      %v1807 = vpop.f32.mrb[0].mxu0
      %1808 = vmatprep.mubr.f32.mxu0 0.0
      %1809 = vmatmul.mubr.f32.gmra.mrb[0].mxu0 %v1622
      %v1810 = vpop.f32.mrb[0].mxu0
      %v1811 = vadd.f32 0.0, %v1810
      %v1812 = vpop.f32.mrb[0].mxu0
      %1813 = vmatprep.mubr.f32.mxu0 0.0
      %1814 = vmatmul.mubr.f32.gmra.mrb[0].mxu0 %v1625
      %v1815 = vpop.f32.mrb[0].mxu0
      %v1816 = vadd.f32 0.0, %v1815
      %v1817 = vpop.f32.mrb[0].mxu0
      %1818 = vmatprep.mubr.f32.mxu0 0.0
      %1819 = vmatmul.mubr.f32.gmra.mrb[0].mxu0 %v1628
      %v1820 = vpop.f32.mrb[0].mxu0
      %v1821 = vadd.f32 0.0, %v1820
      %v1822 = vpop.f32.mrb[0].mxu0
      %1823 = vmatprep.mubr.f32.mxu0 0.0
      %1824 = vmatmul.mubr.f32.gmra.mrb[0].mxu0 %v1631
      %v1825 = vpop.f32.mrb[0].mxu0
      %v1826 = vadd.f32 0.0, %v1825
      %v1827 = vpop.f32.mrb[0].mxu0
      %1828 = vmatprep.mubr.f32.mxu0 0.0
      %1829 = vmatmul.mubr.f32.gmra.mrb[0].mxu0 %v1634
      %v1830 = vpop.f32.mrb[0].mxu0
      %v1831 = vadd.f32 0.0, %v1830
      %v1832 = vpop.f32.mrb[0].mxu0
      %1833 = vmatprep.mubr.f32.mxu0 0.0
      %1834 = vmatmul.mubr.f32.gmra.mrb[0].mxu0 %v1637
      %v1835 = vpop.f32.mrb[0].mxu0
      %v1836 = vadd.f32 0.0, %v1835
      %v1837 = vpop.f32.mrb[0].mxu0
      %1838 = vmatprep.mubr.f32.mxu0 0.0
      %1839 = vmatmul.mubr.f32.gmra.mrb[0].mxu0 %v1640
      %v1840 = vpop.f32.mrb[0].mxu0
      %v1841 = vadd.f32 0.0, %v1840
      %v1842 = vpop.f32.mrb[0].mxu0
      %1843 = vmatprep.mubr.f32.mxu0 0.0
      %1844 = vmatmul.mubr.f32.gmra.mrb[0].mxu0 %v1643
      %v1845 = vpop.f32.mrb[0].mxu0
      %v1846 = vadd.f32 0.0, %v1845
      %v1847 = vpop.f32.mrb[0].mxu0
      %1848 = vmatprep.mubr.f32.mxu0 0.0
      %1849 = vmatmul.mubr.f32.gmra.mrb[0].mxu0 %v1646
      %v1850 = vpop.f32.mrb[0].mxu0
      %v1851 = vadd.f32 0.0, %v1850
      %v1852 = vpop.f32.mrb[0].mxu0
      %1853 = vmatprep.mubr.f32.mxu0 0.0
      %1854 = vmatmul.mubr.f32.gmra.mrb[0].mxu0 %v1649
      %v1855 = vpop.f32.mrb[0].mxu0
      %v1856 = vadd.f32 0.0, %v1855
      %v1857 = vpop.f32.mrb[0].mxu0
      %1858 = vmatprep.mubr.f32.mxu0 0.0
      %1859 = vmatmul.mubr.f32.gmra.mrb[0].mxu0 %v1652
      %v1860 = vpop.f32.mrb[0].mxu0
      %v1861 = vadd.f32 0.0, %v1860
      %v1862 = vpop.f32.mrb[0].mxu0
      %1863 = vmatprep.mubr.f32.mxu0 0.0
      %1864 = vmatmul.mubr.f32.gmra.mrb[0].mxu0 %v1655
      %v1865 = vpop.f32.mrb[0].mxu0
      %v1866 = vadd.f32 0.0, %v1865
      %v1867 = vpop.f32.mrb[0].mxu0
      %1868 = vmatprep.mubr.f32.mxu0 0.0
      %1869 = vmatmul.mubr.f32.gmra.mrb[0].mxu0 %v1658
      %v1870 = vpop.f32.mrb[0].mxu0
      %v1871 = vadd.f32 0.0, %v1870
      %v1872 = vpop.f32.mrb[0].mxu0
      %1873 = vmatprep.mubr.f32.mxu0 0.0
      %1874 = vmatmul.mubr.f32.gmra.mrb[0].mxu0 %v1661
      %v1875 = vpop.f32.mrb[0].mxu0
      %v1876 = vadd.f32 0.0, %v1875
      %v1877 = vpop.f32.mrb[0].mxu0
      %1878 = vmatprep.mubr.f32.mxu0 0.0
      %1879 = vmatmul.mubr.f32.gmra.mrb[0].mxu0 %v1664
      %v1880 = vpop.f32.mrb[0].mxu0
      %v1881 = vadd.f32 0.0, %v1880
      %v1882 = vpop.f32.mrb[0].mxu0
      %1883 = vmatprep.mubr.f32.mxu0 0.0
      %1884 = vmatmul.mubr.f32.gmra.mrb[0].mxu0 %v1667
      %v1885 = vpop.f32.mrb[0].mxu0
      %v1886 = vadd.f32 0.0, %v1885
      %v1887 = vpop.f32.mrb[0].mxu0
      %1888 = vmatprep.mubr.f32.mxu0 0.0
      %1889 = vmatmul.mubr.f32.gmra.mrb[0].mxu0 %v1670
      %v1890 = vpop.f32.mrb[0].mxu0
      %v1891 = vadd.f32 0.0, %v1890
      %v1892 = vpop.f32.mrb[0].mxu0
      %1893 = vmatprep.mubr.f32.mxu0 0.0
      %1894 = vmatmul.mubr.f32.gmra.mrb[0].mxu0 %v1673
      %v1895 = vpop.f32.mrb[0].mxu0
      %v1896 = vadd.f32 0.0, %v1895
      %v1897 = vpop.f32.mrb[0].mxu0
      %1898 = vmatprep.mubr.f32.mxu0 0.0
      %1899 = vmatmul.mubr.f32.gmra.mrb[0].mxu0 %v1676
      %v1900 = vpop.f32.mrb[0].mxu0
      %v1901 = vadd.f32 0.0, %v1900
      %v1902 = vpop.f32.mrb[0].mxu0
      %1903 = vmatprep.mubr.f32.mxu0 0.0
      %1904 = vmatmul.mubr.f32.gmra.mrb[0].mxu0 %v1679
      %v1905 = vpop.f32.mrb[0].mxu0
      %v1906 = vadd.f32 0.0, %v1905
      %v1907 = vpop.f32.mrb[0].mxu0
      %1908 = vdwg.mxu0
      %v1909 = vadd.f32 %v1391, %v1751
      %v1910 = vadd.f32 %v1396, %v1756
      %v1911 = vadd.f32 %v1401, %v1761
      %v1912 = vadd.f32 %v1406, %v1766
      %v1913 = vadd.f32 %v1411, %v1771
      %v1914 = vadd.f32 %v1416, %v1776
      %v1915 = vadd.f32 %v1421, %v1781
      %v1916 = vadd.f32 %v1426, %v1786
      %v1917 = vadd.f32 %v1431, %v1791
      %v1918 = vadd.f32 %v1436, %v1796
      %v1919 = vadd.f32 %v1441, %v1801
      %v1920 = vadd.f32 %v1446, %v1806
      %v1921 = vadd.f32 %v1451, %v1811
      %v1922 = vadd.f32 %v1456, %v1816
      %v1923 = vadd.f32 %v1461, %v1821
      %v1924 = vadd.f32 %v1466, %v1826
      %v1925 = vadd.f32 %v1471, %v1831
      %v1926 = vadd.f32 %v1476, %v1836
      %v1927 = vadd.f32 %v1481, %v1841
      %v1928 = vadd.f32 %v1486, %v1846
      %v1929 = vadd.f32 %v1491, %v1851
      %v1930 = vadd.f32 %v1496, %v1856
      %v1931 = vadd.f32 %v1501, %v1861
      %v1932 = vadd.f32 %v1506, %v1866
      %v1933 = vadd.f32 %v1511, %v1871
      %v1934 = vadd.f32 %v1516, %v1876
      %v1935 = vadd.f32 %v1521, %v1881
      %v1936 = vadd.f32 %v1526, %v1886
      %v1937 = vadd.f32 %v1531, %v1891
      %v1938 = vadd.f32 %v1536, %v1896
      %v1939 = vadd.f32 %v1541, %v1901
      %v1940 = vadd.f32 %v1546, %v1906
      %v1942 = vlaneseq
      %v1943 = vshrl.u32 %v1942, 7
      %v1944 = vsub.s32 0, %v1943
      %v1945 = vrot.slane %v828, %v1944
      %v1947 = vadd.f32 %v1909, %v1945
      %v1948 = vadd.f32 %v1910, %v1945
      %v1949 = vadd.f32 %v1911, %v1945
      %v1950 = vadd.f32 %v1912, %v1945
      %v1951 = vadd.f32 %v1913, %v1945
      %v1952 = vadd.f32 %v1914, %v1945
      %v1953 = vadd.f32 %v1915, %v1945
      %v1954 = vadd.f32 %v1916, %v1945
      %v1955 = vadd.f32 %v1917, %v1945
      %v1956 = vadd.f32 %v1918, %v1945
      %v1957 = vadd.f32 %v1919, %v1945
      %v1958 = vadd.f32 %v1920, %v1945
      %v1959 = vadd.f32 %v1921, %v1945
      %v1960 = vadd.f32 %v1922, %v1945
      %v1961 = vadd.f32 %v1923, %v1945
      %v1962 = vadd.f32 %v1924, %v1945
      %v1963 = vadd.f32 %v1925, %v1945
      %v1964 = vadd.f32 %v1926, %v1945
      %v1965 = vadd.f32 %v1927, %v1945
      %v1966 = vadd.f32 %v1928, %v1945
      %v1967 = vadd.f32 %v1929, %v1945
      %v1968 = vadd.f32 %v1930, %v1945
      %v1969 = vadd.f32 %v1931, %v1945
      %v1970 = vadd.f32 %v1932, %v1945
      %v1971 = vadd.f32 %v1933, %v1945
      %v1972 = vadd.f32 %v1934, %v1945
      %v1973 = vadd.f32 %v1935, %v1945
      %v1974 = vadd.f32 %v1936, %v1945
      %v1975 = vadd.f32 %v1937, %v1945
      %v1976 = vadd.f32 %v1938, %v1945
      %v1977 = vadd.f32 %v1939, %v1945
      %v1978 = vadd.f32 %v1940, %v1945
      %vm1979 = vcmask 130048
      %1980 = vst.msk [vmem:[%s318] sm:$0xff] %vm1979, %v1947
      %1981 = vst.msk [vmem:[%s318 + $0x8] sm:$0xff] %vm1979, %v1948
      %1982 = vst.msk [vmem:[%s318 + $0x10] sm:$0xff] %vm1979, %v1949
      %1983 = vst.msk [vmem:[%s318 + $0x18] sm:$0xff] %vm1979, %v1950
      %1984 = vst.msk [vmem:[%s318 + $0x20] sm:$0xff] %vm1979, %v1951
      %1985 = vst.msk [vmem:[%s318 + $0x28] sm:$0xff] %vm1979, %v1952
      %1986 = vst.msk [vmem:[%s318 + $0x30] sm:$0xff] %vm1979, %v1953
      %1987 = vst.msk [vmem:[%s318 + $0x38] sm:$0xff] %vm1979, %v1954
      %1988 = vst.msk [vmem:[%s318 + $0x40] sm:$0xff] %vm1979, %v1955
      %1989 = vst.msk [vmem:[%s318 + $0x48] sm:$0xff] %vm1979, %v1956
      %1990 = vst.msk [vmem:[%s318 + $0x50] sm:$0xff] %vm1979, %v1957
      %1991 = vst.msk [vmem:[%s318 + $0x58] sm:$0xff] %vm1979, %v1958
      %1992 = vst.msk [vmem:[%s318 + $0x60] sm:$0xff] %vm1979, %v1959
      %1993 = vst.msk [vmem:[%s318 + $0x68] sm:$0xff] %vm1979, %v1960
      %1994 = vst.msk [vmem:[%s318 + $0x70] sm:$0xff] %vm1979, %v1961
      %1995 = vst.msk [vmem:[%s318 + $0x78] sm:$0xff] %vm1979, %v1962
      %1996 = vst.msk [vmem:[%s318 + $0x80] sm:$0xff] %vm1979, %v1963
      %1997 = vst.msk [vmem:[%s318 + $0x88] sm:$0xff] %vm1979, %v1964
      %1998 = vst.msk [vmem:[%s318 + $0x90] sm:$0xff] %vm1979, %v1965
      %1999 = vst.msk [vmem:[%s318 + $0x98] sm:$0xff] %vm1979, %v1966
      %2000 = vst.msk [vmem:[%s318 + $0xa0] sm:$0xff] %vm1979, %v1967
      %2001 = vst.msk [vmem:[%s318 + $0xa8] sm:$0xff] %vm1979, %v1968
      %2002 = vst.msk [vmem:[%s318 + $0xb0] sm:$0xff] %vm1979, %v1969
      %2003 = vst.msk [vmem:[%s318 + $0xb8] sm:$0xff] %vm1979, %v1970
      %2004 = vst.msk [vmem:[%s318 + $0xc0] sm:$0xff] %vm1979, %v1971
      %2005 = vst.msk [vmem:[%s318 + $0xc8] sm:$0xff] %vm1979, %v1972
      %2006 = vst.msk [vmem:[%s318 + $0xd0] sm:$0xff] %vm1979, %v1973
      %2007 = vst.msk [vmem:[%s318 + $0xd8] sm:$0xff] %vm1979, %v1974
      %2008 = vst.msk [vmem:[%s318 + $0xe0] sm:$0xff] %vm1979, %v1975
      %2009 = vst.msk [vmem:[%s318 + $0xe8] sm:$0xff] %vm1979, %v1976
      %2010 = vst.msk [vmem:[%s318 + $0xf0] sm:$0xff] %vm1979, %v1977
      %2011 = vst.msk [vmem:[%s318 + $0xf8] sm:$0xff] %vm1979, %v1978
      %s2012 = smul.u32 16, %s20
      %p2013 = scmp.lt.s32.totalorder %s19, 1
      %s2014 = scalar_select %p2013, %s19, 1
      %p2015 = scmp.lt.s32.totalorder %s2012, 15
      %s2016 = scalar_select %p2015, %s2012, 15
      %s2017 = smul.addr %s2016, 2
      %s2018 = smul.addr %s2014, 32
      %s2019 = sadd.s32 %s2017, %s2018
      %s2020 = smul.addr %s2019, 8
      %s2021 = scalar_lea.vmem %s4, %s2020
      // Predicated region
      $region37: #{upsample_forward.1} parent=35 // pred_check
        %p2022 = pneg %p149
      $region38: #{upsample_forward.1} parent=35 // pred_check_branch
        %2024 = sbr.rel (%p2022) target = $region40
      $region39: #{upsample_forward.1} parent=35 // pred_region
        %s2025 = smul.u32 16, %s20
      $region40: #{upsample_forward.1} parent=35 // pred_fallthru
        _
    $region36: #{upsample_forward.1} parent=5 // pred_fallthru
      _
    %p2026 = scmp.le.s32.totalorder 2, %s10
    // Predicated region
    $region41: #{upsample_forward.1} parent=5 // pred_check
      %p2027 = pneg %p2026
    $region42: #{upsample_forward.1} parent=5 // pred_check_branch
      %2029 = sbr.rel (%p2027) target = $region44
    $region43: #{upsample_forward.1} parent=5 // pred_region
      %s2030 = ssub.s32 %s10, 2
      // Predicated region
      $region45: #{upsample_forward.1} parent=43 // pred_check
        %p2031 = pneg %p155
      $region46: #{upsample_forward.1} parent=43 // pred_check_branch
        %2033 = sbr.rel (%p2031) target = $region48
      $region47: #{upsample_forward.1} parent=43 // pred_region
        %s2034 = smul.u32 16, %s22
        %p2035 = scmp.lt.s32.totalorder %s21, 1
        %s2036 = scalar_select %p2035, %s21, 1
        %p2037 = scmp.lt.s32.totalorder %s2034, 15
        %s2038 = scalar_select %p2037, %s2034, 15
        %s2039 = smul.addr %s2038, 2
        %s2040 = smul.addr %s2036, 32
        %s2041 = sadd.s32 %s2039, %s2040
        %s2042 = smul.addr %s2041, 8
        %s2043 = scalar_lea.vmem %s4, %s2042
      $region48: #{upsample_forward.1} parent=43 // pred_fallthru
        _
    $region44: #{upsample_forward.1} parent=5 // pred_fallthru
      _
  $region6: #{upsample_forward.1} parent=0 // loop_footer
    %s14 = sadd.s32 1, %s10
  $region7: #{upsample_forward.1} parent=0 // loop_footer_branch
    %9 = sbr.rel target = $region3
  $region8: #{upsample_forward.1} parent=0 // loop_exit
    _

</llo_original>
